<compile_context>
chip_gen: v7x
topology: tpu7x:2x2x1
jax: 0.10.0
libtpu: 0.0.40
codegen_flags: <defaults>
</compile_context>

<pallas_src>
import functools
import math

import jax
import jax.numpy as jnp
from jax import lax
from jax.experimental import pallas as pl
from jax.experimental.pallas import tpu as pltpu


def mha_kernel(q_ref, k_ref, v_ref,
               wq_ref, wk_ref, wv_ref, wo_ref,
               bq_ref, bk_ref, bv_ref, bo_ref,
               o_ref, *, n_heads, d_k, block_b, seq):
    Bt, S = block_b, seq
    Up = q_ref.shape[-1]            # padded feature dim (multiple of 128)
    M = Bt * S

    # ---- input projections: one big (M, Up) x (Up, Up) matmul each ---------
    # Weights arrive pre-transposed (in, out) and in bf16; scale for Q already
    # folded in on the host. Cast activations to bf16, accumulate in f32.
    x_q = q_ref[...].reshape(M, Up).astype(jnp.bfloat16)
    x_k = k_ref[...].reshape(M, Up).astype(jnp.bfloat16)
    x_v = v_ref[...].reshape(M, Up).astype(jnp.bfloat16)

    Q = jnp.dot(x_q, wq_ref[...], preferred_element_type=jnp.float32) + bq_ref[...]
    K = jnp.dot(x_k, wk_ref[...], preferred_element_type=jnp.float32) + bk_ref[...]
    V = jnp.dot(x_v, wv_ref[...], preferred_element_type=jnp.float32) + bv_ref[...]

    Qb = Q.astype(jnp.bfloat16)
    Kb = K.astype(jnp.bfloat16)
    Vb = V.astype(jnp.bfloat16)

    wo = wo_ref[...]                # (Up, Up) bf16, pre-transposed
    bo = bo_ref[...]                # (1, Up) f32

    # ---- per (batch, head) scaled dot-product attention --------------------
    # Heads are static lane slices; head outputs are accumulated through the
    # matching row-slice of the output projection (no concat).
    contract_last = (((1,), (1,)), ((), ()))
    for b in range(Bt):
        r0 = b * S
        out_b = jnp.zeros((S, Up), jnp.float32)
        for h in range(n_heads):
            c0 = h * d_k
            qh = Qb[r0:r0 + S, c0:c0 + d_k]          # (S, d_k) bf16
            kh = Kb[r0:r0 + S, c0:c0 + d_k]
            vh = Vb[r0:r0 + S, c0:c0 + d_k]

            # scores = (Q/sqrt(d_k)) K^T, contracting last dims (no transpose)
            s = lax.dot_general(qh, kh, contract_last,
                                preferred_element_type=jnp.float32)   # (S, S)
            s = s - jnp.max(s, axis=-1, keepdims=True)
            e = jnp.exp(s)
            denom = jnp.sum(e, axis=-1, keepdims=True)                # (S, 1)

            # Deferred normalization: (exp @ V) * (1/denom) on the small tile.
            o_h = jnp.dot(e.astype(jnp.bfloat16), vh,
                          preferred_element_type=jnp.float32)         # (S, d_k)
            o_h = o_h * pl.reciprocal(denom, approx=True)

            # Accumulate this head through its slice of the output projection.
            out_b = out_b + jnp.dot(o_h.astype(jnp.bfloat16),
                                    wo[c0:c0 + d_k, :],
                                    preferred_element_type=jnp.float32)

        o_ref[b] = (out_b + bo).astype(o_ref.dtype)


def _choose_block_b(B, S, target_rows=256):
    bt = max(1, min(B, target_rows // max(S, 1)))
    while B % bt != 0:
        bt -= 1
    return bt


def multi_headed_attention(query, key, value, params, *, n_heads):
    """query/key/value: (B, S, U) float32. params: PyTorch-layout W (out,in) / b (U,)."""
    B, S, U = query.shape
    assert U % n_heads == 0
    d_k = U // n_heads
    scale = 1.0 / math.sqrt(d_k)

    # Pad the feature dim to a multiple of 128 for lane-dense tiles.
    Up = ((U + 127) // 128) * 128
    pad = Up - U

    def pad_x(x):
        return jnp.pad(x, ((0, 0), (0, 0), (0, pad))) if pad else x

    def prep_w(w, s=1.0):
        # (out, in) -> pre-transposed (in, out), optional scale fold, pad, bf16.
        wt = (w.T * s).astype(jnp.float32)
        if pad:
            wt = jnp.pad(wt, ((0, pad), (0, pad)))
        return wt.astype(jnp.bfloat16)

    def prep_b(b, s=1.0):
        bb = (b * s).reshape(1, U).astype(jnp.float32)
        return jnp.pad(bb, ((0, 0), (0, pad))) if pad else bb

    wq = prep_w(params["wq"], scale)   # fold 1/sqrt(d_k) into Q projection
    wk = prep_w(params["wk"])
    wv = prep_w(params["wv"])
    wo = prep_w(params["wo"])
    bq = prep_b(params["bq"], scale)
    bk = prep_b(params["bk"])
    bv = prep_b(params["bv"])
    bo = prep_b(params["bo"])

    qx, kx, vx = pad_x(query), pad_x(key), pad_x(value)

    Bt = _choose_block_b(B, S)
    kernel = functools.partial(mha_kernel, n_heads=n_heads, d_k=d_k,
                               block_b=Bt, seq=S)

    x_spec = pl.BlockSpec((Bt, S, Up), lambda i: (i, 0, 0))
    w_spec = pl.BlockSpec((Up, Up), lambda i: (0, 0))
    b_spec = pl.BlockSpec((1, Up), lambda i: (0, 0))

    out = pl.pallas_call(
        kernel,
        out_shape=jax.ShapeDtypeStruct((B, S, Up), jnp.float32),
        grid_spec=pltpu.PrefetchScalarGridSpec(
            num_scalar_prefetch=0,
            grid=(B // Bt,),
            in_specs=[x_spec, x_spec, x_spec,
                      w_spec, w_spec, w_spec, w_spec,
                      b_spec, b_spec, b_spec, b_spec],
            out_specs=x_spec,
        ),
        compiler_params=pltpu.CompilerParams(
            dimension_semantics=("parallel",),
            vmem_limit_bytes=64 * 1024 * 1024),
    )(qx, kx, vx, wq, wk, wv, wo, bq, bk, bv, bo)

    return out[:, :, :U] if pad else out


def init_params(key, n_units):
    """Deterministic init matching nn.init.uniform_(-sqrt(1/U), sqrt(1/U))."""
    bound = math.sqrt(1.0 / n_units)
    names = ["wq", "wk", "wv", "wo", "bq", "bk", "bv", "bo"]
    keys = jax.random.split(key, len(names))
    params = {}
    for name, k in zip(names, keys):
        shape = (n_units, n_units) if name.startswith("w") else (n_units,)
        params[name] = jax.random.uniform(
            k, shape, dtype=jnp.float32, minval=-bound, maxval=bound)
    return params


def reference(query, key, value, params, *, n_heads):
    """Pure-JAX reference mirroring the PyTorch forward (mask=None, eval)."""
    B, S, U = query.shape
    d_k = U // n_heads

    def lin(x, w, b):
        return x @ w.T + b

    Q = lin(query, params["wq"], params["bq"]).reshape(B, S, n_heads, d_k).transpose(0, 2, 1, 3)
    K = lin(key, params["wk"], params["bk"]).reshape(B, S, n_heads, d_k).transpose(0, 2, 1, 3)
    V = lin(value, params["wv"], params["bv"]).reshape(B, S, n_heads, d_k).transpose(0, 2, 1, 3)
    scores = jnp.einsum("bhqd,bhkd->bhqk", Q, K) / math.sqrt(d_k)
    probs = jax.nn.softmax(scores, axis=-1)
    ctx = jnp.einsum("bhqk,bhkd->bhqd", probs, V)
    concat = ctx.transpose(0, 2, 1, 3).reshape(B, S, U)
    return lin(concat, params["wo"], params["bo"])


if __name__ == "__main__":
    B, S, n_units, n_heads = 2, 8, 32, 4

    root = jax.random.PRNGKey(0)
    k_p, k_q, k_k, k_v = jax.random.split(root, 4)
    params = init_params(k_p, n_units)
    query = jax.random.normal(k_q, (B, S, n_units), dtype=jnp.float32)
    key = jax.random.normal(k_k, (B, S, n_units), dtype=jnp.float32)
    value = jax.random.normal(k_v, (B, S, n_units), dtype=jnp.float32)

    out = multi_headed_attention(query, key, value, params, n_heads=n_heads)
    out = jax.block_until_ready(out)

    ref = reference(query, key, value, params, n_heads=n_heads)
    assert out.shape == (B, S, n_units)
    assert jnp.allclose(out, ref, atol=5e-2, rtol=5e-2), "mismatch vs reference"

    print("KERNEL_OK")
</pallas_src>

<mosaic_0001>
module attributes {stable_mosaic.version = 11 : i64} {
  func.func @mha_kernel(%arg0: i32, %arg1: memref<2x8x128xf32, #tpu.memory_space<vmem>>, %arg2: memref<2x8x128xf32, #tpu.memory_space<vmem>>, %arg3: memref<2x8x128xf32, #tpu.memory_space<vmem>>, %arg4: memref<128x128xbf16, #tpu.memory_space<vmem>>, %arg5: memref<128x128xbf16, #tpu.memory_space<vmem>>, %arg6: memref<128x128xbf16, #tpu.memory_space<vmem>>, %arg7: memref<128x128xbf16, #tpu.memory_space<vmem>>, %arg8: memref<1x128xf32, #tpu.memory_space<vmem>>, %arg9: memref<1x128xf32, #tpu.memory_space<vmem>>, %arg10: memref<1x128xf32, #tpu.memory_space<vmem>>, %arg11: memref<1x128xf32, #tpu.memory_space<vmem>>, %arg12: memref<2x8x128xf32, #tpu.memory_space<vmem>>) attributes {dimension_semantics = [#tpu.dimension_semantics<parallel>], iteration_bounds = array<i64: 1>, scalar_prefetch = 0 : i64, scratch_operands = 0 : i64, tpu.core_type = #tpu.core_type<tc>, window_params = [{transform_indices = @transform_0, window_bounds = array<i64: 2, 8, 128>}, {transform_indices = @transform_1, window_bounds = array<i64: 2, 8, 128>}, {transform_indices = @transform_2, window_bounds = array<i64: 2, 8, 128>}, {pipeline_mode = #tpu.pipeline_mode<synchronous>, transform_indices = @transform_3, window_bounds = array<i64: 128, 128>}, {pipeline_mode = #tpu.pipeline_mode<synchronous>, transform_indices = @transform_4, window_bounds = array<i64: 128, 128>}, {pipeline_mode = #tpu.pipeline_mode<synchronous>, transform_indices = @transform_5, window_bounds = array<i64: 128, 128>}, {pipeline_mode = #tpu.pipeline_mode<synchronous>, transform_indices = @transform_6, window_bounds = array<i64: 128, 128>}, {pipeline_mode = #tpu.pipeline_mode<synchronous>, transform_indices = @transform_7, window_bounds = array<i64: 1, 128>}, {pipeline_mode = #tpu.pipeline_mode<synchronous>, transform_indices = @transform_8, window_bounds = array<i64: 1, 128>}, {pipeline_mode = #tpu.pipeline_mode<synchronous>, transform_indices = @transform_9, window_bounds = array<i64: 1, 128>}, {pipeline_mode = #tpu.pipeline_mode<synchronous>, transform_indices = @transform_10, window_bounds = array<i64: 1, 128>}, {transform_indices = @transform_11, window_bounds = array<i64: 2, 8, 128>}]} {
    %c0 = arith.constant 0 : index
    %c0_0 = arith.constant 0 : index
    %c0_1 = arith.constant 0 : index
    %0 = vector.load %arg1[%c0, %c0_0, %c0_1] : memref<2x8x128xf32, #tpu.memory_space<vmem>>, vector<2x8x128xf32>
    %1 = vector.shape_cast %0 : vector<2x8x128xf32> to vector<16x128xf32>
    %2 = arith.truncf %1 : vector<16x128xf32> to vector<16x128xbf16>
    %c0_2 = arith.constant 0 : index
    %c0_3 = arith.constant 0 : index
    %c0_4 = arith.constant 0 : index
    %3 = vector.load %arg2[%c0_2, %c0_3, %c0_4] : memref<2x8x128xf32, #tpu.memory_space<vmem>>, vector<2x8x128xf32>
    %4 = vector.shape_cast %3 : vector<2x8x128xf32> to vector<16x128xf32>
    %5 = arith.truncf %4 : vector<16x128xf32> to vector<16x128xbf16>
    %c0_5 = arith.constant 0 : index
    %c0_6 = arith.constant 0 : index
    %c0_7 = arith.constant 0 : index
    %6 = vector.load %arg3[%c0_5, %c0_6, %c0_7] : memref<2x8x128xf32, #tpu.memory_space<vmem>>, vector<2x8x128xf32>
    %7 = vector.shape_cast %6 : vector<2x8x128xf32> to vector<16x128xf32>
    %8 = arith.truncf %7 : vector<16x128xf32> to vector<16x128xbf16>
    %c0_8 = arith.constant 0 : index
    %c0_9 = arith.constant 0 : index
    %9 = vector.load %arg4[%c0_8, %c0_9] : memref<128x128xbf16, #tpu.memory_space<vmem>>, vector<128x128xbf16>
    %cst = arith.constant dense<0.000000e+00> : vector<16x128xf32>
    %10 = tpu.matmul %2, %9, %cst {dimension_numbers = #tpu.dot_dimension_numbers<[1], [0], [0], [1], [0, 0, 1, 1], [], []>} : vector<16x128xbf16>, vector<128x128xbf16>, vector<16x128xf32> -> vector<16x128xf32>
    %c0_10 = arith.constant 0 : index
    %c0_11 = arith.constant 0 : index
    %11 = vector.load %arg8[%c0_10, %c0_11] : memref<1x128xf32, #tpu.memory_space<vmem>>, vector<1x128xf32>
    %12 = vector.broadcast %11 : vector<1x128xf32> to vector<16x128xf32>
    %13 = arith.addf %10, %12 : vector<16x128xf32>
    %c0_12 = arith.constant 0 : index
    %c0_13 = arith.constant 0 : index
    %14 = vector.load %arg5[%c0_12, %c0_13] : memref<128x128xbf16, #tpu.memory_space<vmem>>, vector<128x128xbf16>
    %cst_14 = arith.constant dense<0.000000e+00> : vector<16x128xf32>
    %15 = tpu.matmul %5, %14, %cst_14 {dimension_numbers = #tpu.dot_dimension_numbers<[1], [0], [0], [1], [0, 0, 1, 1], [], []>} : vector<16x128xbf16>, vector<128x128xbf16>, vector<16x128xf32> -> vector<16x128xf32>
    %c0_15 = arith.constant 0 : index
    %c0_16 = arith.constant 0 : index
    %16 = vector.load %arg9[%c0_15, %c0_16] : memref<1x128xf32, #tpu.memory_space<vmem>>, vector<1x128xf32>
    %17 = vector.broadcast %16 : vector<1x128xf32> to vector<16x128xf32>
    %18 = arith.addf %15, %17 : vector<16x128xf32>
    %c0_17 = arith.constant 0 : index
    %c0_18 = arith.constant 0 : index
    %19 = vector.load %arg6[%c0_17, %c0_18] : memref<128x128xbf16, #tpu.memory_space<vmem>>, vector<128x128xbf16>
    %cst_19 = arith.constant dense<0.000000e+00> : vector<16x128xf32>
    %20 = tpu.matmul %8, %19, %cst_19 {dimension_numbers = #tpu.dot_dimension_numbers<[1], [0], [0], [1], [0, 0, 1, 1], [], []>} : vector<16x128xbf16>, vector<128x128xbf16>, vector<16x128xf32> -> vector<16x128xf32>
    %c0_20 = arith.constant 0 : index
    %c0_21 = arith.constant 0 : index
    %21 = vector.load %arg10[%c0_20, %c0_21] : memref<1x128xf32, #tpu.memory_space<vmem>>, vector<1x128xf32>
    %22 = vector.broadcast %21 : vector<1x128xf32> to vector<16x128xf32>
    %23 = arith.addf %20, %22 : vector<16x128xf32>
    %24 = arith.truncf %13 : vector<16x128xf32> to vector<16x128xbf16>
    %25 = arith.truncf %18 : vector<16x128xf32> to vector<16x128xbf16>
    %26 = arith.truncf %23 : vector<16x128xf32> to vector<16x128xbf16>
    %c0_22 = arith.constant 0 : index
    %c0_23 = arith.constant 0 : index
    %27 = vector.load %arg7[%c0_22, %c0_23] : memref<128x128xbf16, #tpu.memory_space<vmem>>, vector<128x128xbf16>
    %c0_24 = arith.constant 0 : index
    %c0_25 = arith.constant 0 : index
    %28 = vector.load %arg11[%c0_24, %c0_25] : memref<1x128xf32, #tpu.memory_space<vmem>>, vector<1x128xf32>
    %cst_26 = arith.constant 0.000000e+00 : f32
    %29 = vector.broadcast %cst_26 : f32 to vector<8x128xf32>
    %30 = vector.extract_strided_slice %24 {offsets = [0, 0], sizes = [8, 8], strides = [1, 1]} : vector<16x128xbf16> to vector<8x8xbf16>
    %31 = vector.extract_strided_slice %25 {offsets = [0, 0], sizes = [8, 8], strides = [1, 1]} : vector<16x128xbf16> to vector<8x8xbf16>
    %32 = vector.extract_strided_slice %26 {offsets = [0, 0], sizes = [8, 8], strides = [1, 1]} : vector<16x128xbf16> to vector<8x8xbf16>
    %cst_27 = arith.constant dense<0.000000e+00> : vector<8x8xf32>
    %33 = tpu.matmul %30, %31, %cst_27 {dimension_numbers = #tpu.dot_dimension_numbers<[1], [1], [0], [0], [0, 0, 1, 0], [], []>} : vector<8x8xbf16>, vector<8x8xbf16>, vector<8x8xf32> -> vector<8x8xf32>
    %cst_28 = arith.constant dense<0xFF800000> : vector<8xf32>
    %34 = vector.multi_reduction <maximumf>, %33, %cst_28 [1] : vector<8x8xf32> to vector<8xf32>
    %35 = vector.shape_cast %34 : vector<8xf32> to vector<8x1xf32>
    %36 = vector.broadcast %35 : vector<8x1xf32> to vector<8x8xf32>
    %37 = arith.subf %33, %36 : vector<8x8xf32>
    %38 = math.exp %37 : vector<8x8xf32>
    %cst_29 = arith.constant dense<0.000000e+00> : vector<8xf32>
    %39 = vector.multi_reduction <add>, %38, %cst_29 [1] : vector<8x8xf32> to vector<8xf32>
    %40 = vector.shape_cast %39 : vector<8xf32> to vector<8x1xf32>
    %41 = arith.truncf %38 : vector<8x8xf32> to vector<8x8xbf16>
    %cst_30 = arith.constant dense<0.000000e+00> : vector<8x8xf32>
    %42 = tpu.matmul %41, %32, %cst_30 {dimension_numbers = #tpu.dot_dimension_numbers<[1], [0], [0], [1], [0, 0, 1, 1], [], []>} : vector<8x8xbf16>, vector<8x8xbf16>, vector<8x8xf32> -> vector<8x8xf32>
    %43 = tpu.reciprocal %40 {approx = true} : vector<8x1xf32> -> vector<8x1xf32>
    %44 = vector.broadcast %43 : vector<8x1xf32> to vector<8x8xf32>
    %45 = arith.mulf %42, %44 : vector<8x8xf32>
    %46 = arith.truncf %45 : vector<8x8xf32> to vector<8x8xbf16>
    %47 = vector.extract_strided_slice %27 {offsets = [0, 0], sizes = [8, 128], strides = [1, 1]} : vector<128x128xbf16> to vector<8x128xbf16>
    %cst_31 = arith.constant dense<0.000000e+00> : vector<8x128xf32>
    %48 = tpu.matmul %46, %47, %cst_31 {dimension_numbers = #tpu.dot_dimension_numbers<[1], [0], [0], [1], [0, 0, 1, 1], [], []>} : vector<8x8xbf16>, vector<8x128xbf16>, vector<8x128xf32> -> vector<8x128xf32>
    %49 = arith.addf %29, %48 : vector<8x128xf32>
    %50 = vector.extract_strided_slice %24 {offsets = [0, 8], sizes = [8, 8], strides = [1, 1]} : vector<16x128xbf16> to vector<8x8xbf16>
    %51 = vector.extract_strided_slice %25 {offsets = [0, 8], sizes = [8, 8], strides = [1, 1]} : vector<16x128xbf16> to vector<8x8xbf16>
    %52 = vector.extract_strided_slice %26 {offsets = [0, 8], sizes = [8, 8], strides = [1, 1]} : vector<16x128xbf16> to vector<8x8xbf16>
    %cst_32 = arith.constant dense<0.000000e+00> : vector<8x8xf32>
    %53 = tpu.matmul %50, %51, %cst_32 {dimension_numbers = #tpu.dot_dimension_numbers<[1], [1], [0], [0], [0, 0, 1, 0], [], []>} : vector<8x8xbf16>, vector<8x8xbf16>, vector<8x8xf32> -> vector<8x8xf32>
    %cst_33 = arith.constant dense<0xFF800000> : vector<8xf32>
    %54 = vector.multi_reduction <maximumf>, %53, %cst_33 [1] : vector<8x8xf32> to vector<8xf32>
    %55 = vector.shape_cast %54 : vector<8xf32> to vector<8x1xf32>
    %56 = vector.broadcast %55 : vector<8x1xf32> to vector<8x8xf32>
    %57 = arith.subf %53, %56 : vector<8x8xf32>
    %58 = math.exp %57 : vector<8x8xf32>
    %cst_34 = arith.constant dense<0.000000e+00> : vector<8xf32>
    %59 = vector.multi_reduction <add>, %58, %cst_34 [1] : vector<8x8xf32> to vector<8xf32>
    %60 = vector.shape_cast %59 : vector<8xf32> to vector<8x1xf32>
    %61 = arith.truncf %58 : vector<8x8xf32> to vector<8x8xbf16>
    %cst_35 = arith.constant dense<0.000000e+00> : vector<8x8xf32>
    %62 = tpu.matmul %61, %52, %cst_35 {dimension_numbers = #tpu.dot_dimension_numbers<[1], [0], [0], [1], [0, 0, 1, 1], [], []>} : vector<8x8xbf16>, vector<8x8xbf16>, vector<8x8xf32> -> vector<8x8xf32>
    %63 = tpu.reciprocal %60 {approx = true} : vector<8x1xf32> -> vector<8x1xf32>
    %64 = vector.broadcast %63 : vector<8x1xf32> to vector<8x8xf32>
    %65 = arith.mulf %62, %64 : vector<8x8xf32>
    %66 = arith.truncf %65 : vector<8x8xf32> to vector<8x8xbf16>
    %67 = vector.extract_strided_slice %27 {offsets = [8, 0], sizes = [8, 128], strides = [1, 1]} : vector<128x128xbf16> to vector<8x128xbf16>
    %cst_36 = arith.constant dense<0.000000e+00> : vector<8x128xf32>
    %68 = tpu.matmul %66, %67, %cst_36 {dimension_numbers = #tpu.dot_dimension_numbers<[1], [0], [0], [1], [0, 0, 1, 1], [], []>} : vector<8x8xbf16>, vector<8x128xbf16>, vector<8x128xf32> -> vector<8x128xf32>
    %69 = arith.addf %49, %68 : vector<8x128xf32>
    %70 = vector.extract_strided_slice %24 {offsets = [0, 16], sizes = [8, 8], strides = [1, 1]} : vector<16x128xbf16> to vector<8x8xbf16>
    %71 = vector.extract_strided_slice %25 {offsets = [0, 16], sizes = [8, 8], strides = [1, 1]} : vector<16x128xbf16> to vector<8x8xbf16>
    %72 = vector.extract_strided_slice %26 {offsets = [0, 16], sizes = [8, 8], strides = [1, 1]} : vector<16x128xbf16> to vector<8x8xbf16>
    %cst_37 = arith.constant dense<0.000000e+00> : vector<8x8xf32>
    %73 = tpu.matmul %70, %71, %cst_37 {dimension_numbers = #tpu.dot_dimension_numbers<[1], [1], [0], [0], [0, 0, 1, 0], [], []>} : vector<8x8xbf16>, vector<8x8xbf16>, vector<8x8xf32> -> vector<8x8xf32>
    %cst_38 = arith.constant dense<0xFF800000> : vector<8xf32>
    %74 = vector.multi_reduction <maximumf>, %73, %cst_38 [1] : vector<8x8xf32> to vector<8xf32>
    %75 = vector.shape_cast %74 : vector<8xf32> to vector<8x1xf32>
    %76 = vector.broadcast %75 : vector<8x1xf32> to vector<8x8xf32>
    %77 = arith.subf %73, %76 : vector<8x8xf32>
    %78 = math.exp %77 : vector<8x8xf32>
    %cst_39 = arith.constant dense<0.000000e+00> : vector<8xf32>
    %79 = vector.multi_reduction <add>, %78, %cst_39 [1] : vector<8x8xf32> to vector<8xf32>
    %80 = vector.shape_cast %79 : vector<8xf32> to vector<8x1xf32>
    %81 = arith.truncf %78 : vector<8x8xf32> to vector<8x8xbf16>
    %cst_40 = arith.constant dense<0.000000e+00> : vector<8x8xf32>
    %82 = tpu.matmul %81, %72, %cst_40 {dimension_numbers = #tpu.dot_dimension_numbers<[1], [0], [0], [1], [0, 0, 1, 1], [], []>} : vector<8x8xbf16>, vector<8x8xbf16>, vector<8x8xf32> -> vector<8x8xf32>
    %83 = tpu.reciprocal %80 {approx = true} : vector<8x1xf32> -> vector<8x1xf32>
    %84 = vector.broadcast %83 : vector<8x1xf32> to vector<8x8xf32>
    %85 = arith.mulf %82, %84 : vector<8x8xf32>
    %86 = arith.truncf %85 : vector<8x8xf32> to vector<8x8xbf16>
    %87 = vector.extract_strided_slice %27 {offsets = [16, 0], sizes = [8, 128], strides = [1, 1]} : vector<128x128xbf16> to vector<8x128xbf16>
    %cst_41 = arith.constant dense<0.000000e+00> : vector<8x128xf32>
    %88 = tpu.matmul %86, %87, %cst_41 {dimension_numbers = #tpu.dot_dimension_numbers<[1], [0], [0], [1], [0, 0, 1, 1], [], []>} : vector<8x8xbf16>, vector<8x128xbf16>, vector<8x128xf32> -> vector<8x128xf32>
    %89 = arith.addf %69, %88 : vector<8x128xf32>
    %90 = vector.extract_strided_slice %24 {offsets = [0, 24], sizes = [8, 8], strides = [1, 1]} : vector<16x128xbf16> to vector<8x8xbf16>
    %91 = vector.extract_strided_slice %25 {offsets = [0, 24], sizes = [8, 8], strides = [1, 1]} : vector<16x128xbf16> to vector<8x8xbf16>
    %92 = vector.extract_strided_slice %26 {offsets = [0, 24], sizes = [8, 8], strides = [1, 1]} : vector<16x128xbf16> to vector<8x8xbf16>
    %cst_42 = arith.constant dense<0.000000e+00> : vector<8x8xf32>
    %93 = tpu.matmul %90, %91, %cst_42 {dimension_numbers = #tpu.dot_dimension_numbers<[1], [1], [0], [0], [0, 0, 1, 0], [], []>} : vector<8x8xbf16>, vector<8x8xbf16>, vector<8x8xf32> -> vector<8x8xf32>
    %cst_43 = arith.constant dense<0xFF800000> : vector<8xf32>
    %94 = vector.multi_reduction <maximumf>, %93, %cst_43 [1] : vector<8x8xf32> to vector<8xf32>
    %95 = vector.shape_cast %94 : vector<8xf32> to vector<8x1xf32>
    %96 = vector.broadcast %95 : vector<8x1xf32> to vector<8x8xf32>
    %97 = arith.subf %93, %96 : vector<8x8xf32>
    %98 = math.exp %97 : vector<8x8xf32>
    %cst_44 = arith.constant dense<0.000000e+00> : vector<8xf32>
    %99 = vector.multi_reduction <add>, %98, %cst_44 [1] : vector<8x8xf32> to vector<8xf32>
    %100 = vector.shape_cast %99 : vector<8xf32> to vector<8x1xf32>
    %101 = arith.truncf %98 : vector<8x8xf32> to vector<8x8xbf16>
    %cst_45 = arith.constant dense<0.000000e+00> : vector<8x8xf32>
    %102 = tpu.matmul %101, %92, %cst_45 {dimension_numbers = #tpu.dot_dimension_numbers<[1], [0], [0], [1], [0, 0, 1, 1], [], []>} : vector<8x8xbf16>, vector<8x8xbf16>, vector<8x8xf32> -> vector<8x8xf32>
    %103 = tpu.reciprocal %100 {approx = true} : vector<8x1xf32> -> vector<8x1xf32>
    %104 = vector.broadcast %103 : vector<8x1xf32> to vector<8x8xf32>
    %105 = arith.mulf %102, %104 : vector<8x8xf32>
    %106 = arith.truncf %105 : vector<8x8xf32> to vector<8x8xbf16>
    %107 = vector.extract_strided_slice %27 {offsets = [24, 0], sizes = [8, 128], strides = [1, 1]} : vector<128x128xbf16> to vector<8x128xbf16>
    %cst_46 = arith.constant dense<0.000000e+00> : vector<8x128xf32>
    %108 = tpu.matmul %106, %107, %cst_46 {dimension_numbers = #tpu.dot_dimension_numbers<[1], [0], [0], [1], [0, 0, 1, 1], [], []>} : vector<8x8xbf16>, vector<8x128xbf16>, vector<8x128xf32> -> vector<8x128xf32>
    %109 = arith.addf %89, %108 : vector<8x128xf32>
    %110 = vector.broadcast %28 : vector<1x128xf32> to vector<8x128xf32>
    %111 = arith.addf %109, %110 : vector<8x128xf32>
    %c0_47 = arith.constant 0 : index
    %c0_48 = arith.constant 0 : index
    %c0_49 = arith.constant 0 : index
    %112 = vector.load %arg12[%c0_47, %c0_48, %c0_49] : memref<2x8x128xf32, #tpu.memory_space<vmem>>, vector<1x8x128xf32>
    %113 = vector.shape_cast %112 : vector<1x8x128xf32> to vector<8x128xf32>
    %114 = vector.shape_cast %111 : vector<8x128xf32> to vector<1x8x128xf32>
    tpu.vector_store %arg12[%c0_47, %c0_48, %c0_49], %114 {strides = array<i32>} : memref<2x8x128xf32, #tpu.memory_space<vmem>>, vector<1x8x128xf32>,
    %cst_50 = arith.constant 0.000000e+00 : f32
    %115 = vector.broadcast %cst_50 : f32 to vector<8x128xf32>
    %116 = vector.extract_strided_slice %24 {offsets = [8, 0], sizes = [8, 8], strides = [1, 1]} : vector<16x128xbf16> to vector<8x8xbf16>
    %117 = vector.extract_strided_slice %25 {offsets = [8, 0], sizes = [8, 8], strides = [1, 1]} : vector<16x128xbf16> to vector<8x8xbf16>
    %118 = vector.extract_strided_slice %26 {offsets = [8, 0], sizes = [8, 8], strides = [1, 1]} : vector<16x128xbf16> to vector<8x8xbf16>
    %cst_51 = arith.constant dense<0.000000e+00> : vector<8x8xf32>
    %119 = tpu.matmul %116, %117, %cst_51 {dimension_numbers = #tpu.dot_dimension_numbers<[1], [1], [0], [0], [0, 0, 1, 0], [], []>} : vector<8x8xbf16>, vector<8x8xbf16>, vector<8x8xf32> -> vector<8x8xf32>
    %cst_52 = arith.constant dense<0xFF800000> : vector<8xf32>
    %120 = vector.multi_reduction <maximumf>, %119, %cst_52 [1] : vector<8x8xf32> to vector<8xf32>
    %121 = vector.shape_cast %120 : vector<8xf32> to vector<8x1xf32>
    %122 = vector.broadcast %121 : vector<8x1xf32> to vector<8x8xf32>
    %123 = arith.subf %119, %122 : vector<8x8xf32>
    %124 = math.exp %123 : vector<8x8xf32>
    %cst_53 = arith.constant dense<0.000000e+00> : vector<8xf32>
    %125 = vector.multi_reduction <add>, %124, %cst_53 [1] : vector<8x8xf32> to vector<8xf32>
    %126 = vector.shape_cast %125 : vector<8xf32> to vector<8x1xf32>
    %127 = arith.truncf %124 : vector<8x8xf32> to vector<8x8xbf16>
    %cst_54 = arith.constant dense<0.000000e+00> : vector<8x8xf32>
    %128 = tpu.matmul %127, %118, %cst_54 {dimension_numbers = #tpu.dot_dimension_numbers<[1], [0], [0], [1], [0, 0, 1, 1], [], []>} : vector<8x8xbf16>, vector<8x8xbf16>, vector<8x8xf32> -> vector<8x8xf32>
    %129 = tpu.reciprocal %126 {approx = true} : vector<8x1xf32> -> vector<8x1xf32>
    %130 = vector.broadcast %129 : vector<8x1xf32> to vector<8x8xf32>
    %131 = arith.mulf %128, %130 : vector<8x8xf32>
    %132 = arith.truncf %131 : vector<8x8xf32> to vector<8x8xbf16>
    %133 = vector.extract_strided_slice %27 {offsets = [0, 0], sizes = [8, 128], strides = [1, 1]} : vector<128x128xbf16> to vector<8x128xbf16>
    %cst_55 = arith.constant dense<0.000000e+00> : vector<8x128xf32>
    %134 = tpu.matmul %132, %133, %cst_55 {dimension_numbers = #tpu.dot_dimension_numbers<[1], [0], [0], [1], [0, 0, 1, 1], [], []>} : vector<8x8xbf16>, vector<8x128xbf16>, vector<8x128xf32> -> vector<8x128xf32>
    %135 = arith.addf %115, %134 : vector<8x128xf32>
    %136 = vector.extract_strided_slice %24 {offsets = [8, 8], sizes = [8, 8], strides = [1, 1]} : vector<16x128xbf16> to vector<8x8xbf16>
    %137 = vector.extract_strided_slice %25 {offsets = [8, 8], sizes = [8, 8], strides = [1, 1]} : vector<16x128xbf16> to vector<8x8xbf16>
    %138 = vector.extract_strided_slice %26 {offsets = [8, 8], sizes = [8, 8], strides = [1, 1]} : vector<16x128xbf16> to vector<8x8xbf16>
    %cst_56 = arith.constant dense<0.000000e+00> : vector<8x8xf32>
    %139 = tpu.matmul %136, %137, %cst_56 {dimension_numbers = #tpu.dot_dimension_numbers<[1], [1], [0], [0], [0, 0, 1, 0], [], []>} : vector<8x8xbf16>, vector<8x8xbf16>, vector<8x8xf32> -> vector<8x8xf32>
    %cst_57 = arith.constant dense<0xFF800000> : vector<8xf32>
    %140 = vector.multi_reduction <maximumf>, %139, %cst_57 [1] : vector<8x8xf32> to vector<8xf32>
    %141 = vector.shape_cast %140 : vector<8xf32> to vector<8x1xf32>
    %142 = vector.broadcast %141 : vector<8x1xf32> to vector<8x8xf32>
    %143 = arith.subf %139, %142 : vector<8x8xf32>
    %144 = math.exp %143 : vector<8x8xf32>
    %cst_58 = arith.constant dense<0.000000e+00> : vector<8xf32>
    %145 = vector.multi_reduction <add>, %144, %cst_58 [1] : vector<8x8xf32> to vector<8xf32>
    %146 = vector.shape_cast %145 : vector<8xf32> to vector<8x1xf32>
    %147 = arith.truncf %144 : vector<8x8xf32> to vector<8x8xbf16>
    %cst_59 = arith.constant dense<0.000000e+00> : vector<8x8xf32>
    %148 = tpu.matmul %147, %138, %cst_59 {dimension_numbers = #tpu.dot_dimension_numbers<[1], [0], [0], [1], [0, 0, 1, 1], [], []>} : vector<8x8xbf16>, vector<8x8xbf16>, vector<8x8xf32> -> vector<8x8xf32>
    %149 = tpu.reciprocal %146 {approx = true} : vector<8x1xf32> -> vector<8x1xf32>
    %150 = vector.broadcast %149 : vector<8x1xf32> to vector<8x8xf32>
    %151 = arith.mulf %148, %150 : vector<8x8xf32>
    %152 = arith.truncf %151 : vector<8x8xf32> to vector<8x8xbf16>
    %153 = vector.extract_strided_slice %27 {offsets = [8, 0], sizes = [8, 128], strides = [1, 1]} : vector<128x128xbf16> to vector<8x128xbf16>
    %cst_60 = arith.constant dense<0.000000e+00> : vector<8x128xf32>
    %154 = tpu.matmul %152, %153, %cst_60 {dimension_numbers = #tpu.dot_dimension_numbers<[1], [0], [0], [1], [0, 0, 1, 1], [], []>} : vector<8x8xbf16>, vector<8x128xbf16>, vector<8x128xf32> -> vector<8x128xf32>
    %155 = arith.addf %135, %154 : vector<8x128xf32>
    %156 = vector.extract_strided_slice %24 {offsets = [8, 16], sizes = [8, 8], strides = [1, 1]} : vector<16x128xbf16> to vector<8x8xbf16>
    %157 = vector.extract_strided_slice %25 {offsets = [8, 16], sizes = [8, 8], strides = [1, 1]} : vector<16x128xbf16> to vector<8x8xbf16>
    %158 = vector.extract_strided_slice %26 {offsets = [8, 16], sizes = [8, 8], strides = [1, 1]} : vector<16x128xbf16> to vector<8x8xbf16>
    %cst_61 = arith.constant dense<0.000000e+00> : vector<8x8xf32>
    %159 = tpu.matmul %156, %157, %cst_61 {dimension_numbers = #tpu.dot_dimension_numbers<[1], [1], [0], [0], [0, 0, 1, 0], [], []>} : vector<8x8xbf16>, vector<8x8xbf16>, vector<8x8xf32> -> vector<8x8xf32>
    %cst_62 = arith.constant dense<0xFF800000> : vector<8xf32>
    %160 = vector.multi_reduction <maximumf>, %159, %cst_62 [1] : vector<8x8xf32> to vector<8xf32>
    %161 = vector.shape_cast %160 : vector<8xf32> to vector<8x1xf32>
    %162 = vector.broadcast %161 : vector<8x1xf32> to vector<8x8xf32>
    %163 = arith.subf %159, %162 : vector<8x8xf32>
    %164 = math.exp %163 : vector<8x8xf32>
    %cst_63 = arith.constant dense<0.000000e+00> : vector<8xf32>
    %165 = vector.multi_reduction <add>, %164, %cst_63 [1] : vector<8x8xf32> to vector<8xf32>
    %166 = vector.shape_cast %165 : vector<8xf32> to vector<8x1xf32>
    %167 = arith.truncf %164 : vector<8x8xf32> to vector<8x8xbf16>
    %cst_64 = arith.constant dense<0.000000e+00> : vector<8x8xf32>
    %168 = tpu.matmul %167, %158, %cst_64 {dimension_numbers = #tpu.dot_dimension_numbers<[1], [0], [0], [1], [0, 0, 1, 1], [], []>} : vector<8x8xbf16>, vector<8x8xbf16>, vector<8x8xf32> -> vector<8x8xf32>
    %169 = tpu.reciprocal %166 {approx = true} : vector<8x1xf32> -> vector<8x1xf32>
    %170 = vector.broadcast %169 : vector<8x1xf32> to vector<8x8xf32>
    %171 = arith.mulf %168, %170 : vector<8x8xf32>
    %172 = arith.truncf %171 : vector<8x8xf32> to vector<8x8xbf16>
    %173 = vector.extract_strided_slice %27 {offsets = [16, 0], sizes = [8, 128], strides = [1, 1]} : vector<128x128xbf16> to vector<8x128xbf16>
    %cst_65 = arith.constant dense<0.000000e+00> : vector<8x128xf32>
    %174 = tpu.matmul %172, %173, %cst_65 {dimension_numbers = #tpu.dot_dimension_numbers<[1], [0], [0], [1], [0, 0, 1, 1], [], []>} : vector<8x8xbf16>, vector<8x128xbf16>, vector<8x128xf32> -> vector<8x128xf32>
    %175 = arith.addf %155, %174 : vector<8x128xf32>
    %176 = vector.extract_strided_slice %24 {offsets = [8, 24], sizes = [8, 8], strides = [1, 1]} : vector<16x128xbf16> to vector<8x8xbf16>
    %177 = vector.extract_strided_slice %25 {offsets = [8, 24], sizes = [8, 8], strides = [1, 1]} : vector<16x128xbf16> to vector<8x8xbf16>
    %178 = vector.extract_strided_slice %26 {offsets = [8, 24], sizes = [8, 8], strides = [1, 1]} : vector<16x128xbf16> to vector<8x8xbf16>
    %cst_66 = arith.constant dense<0.000000e+00> : vector<8x8xf32>
    %179 = tpu.matmul %176, %177, %cst_66 {dimension_numbers = #tpu.dot_dimension_numbers<[1], [1], [0], [0], [0, 0, 1, 0], [], []>} : vector<8x8xbf16>, vector<8x8xbf16>, vector<8x8xf32> -> vector<8x8xf32>
    %cst_67 = arith.constant dense<0xFF800000> : vector<8xf32>
    %180 = vector.multi_reduction <maximumf>, %179, %cst_67 [1] : vector<8x8xf32> to vector<8xf32>
    %181 = vector.shape_cast %180 : vector<8xf32> to vector<8x1xf32>
    %182 = vector.broadcast %181 : vector<8x1xf32> to vector<8x8xf32>
    %183 = arith.subf %179, %182 : vector<8x8xf32>
    %184 = math.exp %183 : vector<8x8xf32>
    %cst_68 = arith.constant dense<0.000000e+00> : vector<8xf32>
    %185 = vector.multi_reduction <add>, %184, %cst_68 [1] : vector<8x8xf32> to vector<8xf32>
    %186 = vector.shape_cast %185 : vector<8xf32> to vector<8x1xf32>
    %187 = arith.truncf %184 : vector<8x8xf32> to vector<8x8xbf16>
    %cst_69 = arith.constant dense<0.000000e+00> : vector<8x8xf32>
    %188 = tpu.matmul %187, %178, %cst_69 {dimension_numbers = #tpu.dot_dimension_numbers<[1], [0], [0], [1], [0, 0, 1, 1], [], []>} : vector<8x8xbf16>, vector<8x8xbf16>, vector<8x8xf32> -> vector<8x8xf32>
    %189 = tpu.reciprocal %186 {approx = true} : vector<8x1xf32> -> vector<8x1xf32>
    %190 = vector.broadcast %189 : vector<8x1xf32> to vector<8x8xf32>
    %191 = arith.mulf %188, %190 : vector<8x8xf32>
    %192 = arith.truncf %191 : vector<8x8xf32> to vector<8x8xbf16>
    %193 = vector.extract_strided_slice %27 {offsets = [24, 0], sizes = [8, 128], strides = [1, 1]} : vector<128x128xbf16> to vector<8x128xbf16>
    %cst_70 = arith.constant dense<0.000000e+00> : vector<8x128xf32>
    %194 = tpu.matmul %192, %193, %cst_70 {dimension_numbers = #tpu.dot_dimension_numbers<[1], [0], [0], [1], [0, 0, 1, 1], [], []>} : vector<8x8xbf16>, vector<8x128xbf16>, vector<8x128xf32> -> vector<8x128xf32>
    %195 = arith.addf %175, %194 : vector<8x128xf32>
    %196 = vector.broadcast %28 : vector<1x128xf32> to vector<8x128xf32>
    %197 = arith.addf %195, %196 : vector<8x128xf32>
    %c1 = arith.constant 1 : index
    %c0_71 = arith.constant 0 : index
    %c0_72 = arith.constant 0 : index
    %198 = vector.load %arg12[%c1, %c0_71, %c0_72] : memref<2x8x128xf32, #tpu.memory_space<vmem>>, vector<1x8x128xf32>
    %199 = vector.shape_cast %198 : vector<1x8x128xf32> to vector<8x128xf32>
    %200 = vector.shape_cast %197 : vector<8x128xf32> to vector<1x8x128xf32>
    tpu.vector_store %arg12[%c1, %c0_71, %c0_72], %200 {strides = array<i32>} : memref<2x8x128xf32, #tpu.memory_space<vmem>>, vector<1x8x128xf32>,
    return
  }
  func.func @transform_0(%arg0: i32) -> (i32, i32, i32) {
    %c0_i32 = arith.constant 0 : i32
    %c0_i32_0 = arith.constant 0 : i32
    %c0_i32_1 = arith.constant 0 : i32
    return %arg0, %c0_i32, %c0_i32_0 : i32, i32, i32
  }
  func.func @transform_1(%arg0: i32) -> (i32, i32, i32) {
    %c0_i32 = arith.constant 0 : i32
    %c0_i32_0 = arith.constant 0 : i32
    %c0_i32_1 = arith.constant 0 : i32
    return %arg0, %c0_i32, %c0_i32_0 : i32, i32, i32
  }
  func.func @transform_2(%arg0: i32) -> (i32, i32, i32) {
    %c0_i32 = arith.constant 0 : i32
    %c0_i32_0 = arith.constant 0 : i32
    %c0_i32_1 = arith.constant 0 : i32
    return %arg0, %c0_i32, %c0_i32_0 : i32, i32, i32
  }
  func.func @transform_3(%arg0: i32) -> (i32, i32) {
    %c0_i32 = arith.constant 0 : i32
    %c0_i32_0 = arith.constant 0 : i32
    %c0_i32_1 = arith.constant 0 : i32
    return %c0_i32, %c0_i32_0 : i32, i32
  }
  func.func @transform_4(%arg0: i32) -> (i32, i32) {
    %c0_i32 = arith.constant 0 : i32
    %c0_i32_0 = arith.constant 0 : i32
    %c0_i32_1 = arith.constant 0 : i32
    return %c0_i32, %c0_i32_0 : i32, i32
  }
  func.func @transform_5(%arg0: i32) -> (i32, i32) {
    %c0_i32 = arith.constant 0 : i32
    %c0_i32_0 = arith.constant 0 : i32
    %c0_i32_1 = arith.constant 0 : i32
    return %c0_i32, %c0_i32_0 : i32, i32
  }
  func.func @transform_6(%arg0: i32) -> (i32, i32) {
    %c0_i32 = arith.constant 0 : i32
    %c0_i32_0 = arith.constant 0 : i32
    %c0_i32_1 = arith.constant 0 : i32
    return %c0_i32, %c0_i32_0 : i32, i32
  }
  func.func @transform_7(%arg0: i32) -> (i32, i32) {
    %c0_i32 = arith.constant 0 : i32
    %c0_i32_0 = arith.constant 0 : i32
    %c0_i32_1 = arith.constant 0 : i32
    return %c0_i32, %c0_i32_0 : i32, i32
  }
  func.func @transform_8(%arg0: i32) -> (i32, i32) {
    %c0_i32 = arith.constant 0 : i32
    %c0_i32_0 = arith.constant 0 : i32
    %c0_i32_1 = arith.constant 0 : i32
    return %c0_i32, %c0_i32_0 : i32, i32
  }
  func.func @transform_9(%arg0: i32) -> (i32, i32) {
    %c0_i32 = arith.constant 0 : i32
    %c0_i32_0 = arith.constant 0 : i32
    %c0_i32_1 = arith.constant 0 : i32
    return %c0_i32, %c0_i32_0 : i32, i32
  }
  func.func @transform_10(%arg0: i32) -> (i32, i32) {
    %c0_i32 = arith.constant 0 : i32
    %c0_i32_0 = arith.constant 0 : i32
    %c0_i32_1 = arith.constant 0 : i32
    return %c0_i32, %c0_i32_0 : i32, i32
  }
  func.func @transform_11(%arg0: i32) -> (i32, i32, i32) {
    %c0_i32 = arith.constant 0 : i32
    %c0_i32_0 = arith.constant 0 : i32
    %c0_i32_1 = arith.constant 0 : i32
    return %arg0, %c0_i32, %c0_i32_0 : i32, i32, i32
  }
}

</mosaic_0001>

<llo_original>
// kernel: tpu_custom_call.1
$region0: #{tpu_custom_call.1}
  #allocation0 [shape = 'u32[]', space=smem, size = 0x4, offset = 0x4, fixed_abs, tag = 'smem constant byte address 0x4 - core index']
  #allocation1 [shape = 'u32[144,128]{1,0:T(1,128)}', space=vmem, size = 0x12000, scoped, tag = 'internal scratch']
  %s0 = inlined_call_operand.hbm [shape: f32[2,8,128], index: 0, kind: input, shape index: {}]
  %s1 = inlined_call_operand.hbm [shape: f32[2,8,128], index: 1, kind: input, shape index: {}]
  %s2 = inlined_call_operand.hbm [shape: f32[2,8,128], index: 2, kind: input, shape index: {}]
  %s3 = inlined_call_operand.hbm [shape: bf16[128,128], index: 3, kind: input, shape index: {}]
  %s4 = inlined_call_operand.hbm [shape: bf16[128,128], index: 4, kind: input, shape index: {}]
  %s5 = inlined_call_operand.hbm [shape: bf16[128,128], index: 5, kind: input, shape index: {}]
  %s6 = inlined_call_operand.hbm [shape: bf16[128,128], index: 6, kind: input, shape index: {}]
  %s7 = inlined_call_operand.hbm [shape: f32[1,128], index: 7, kind: input, shape index: {}]
  %s8 = inlined_call_operand.hbm [shape: f32[1,128], index: 8, kind: input, shape index: {}]
  %s9 = inlined_call_operand.hbm [shape: f32[1,128], index: 9, kind: input, shape index: {}]
  %s10 = inlined_call_operand.hbm [shape: f32[1,128], index: 10, kind: input, shape index: {}]
  %s11 = inlined_call_operand.hbm [shape: f32[2,8,128], index: 11, kind: output, shape index: {}]
  %s12 = sld [smem:[#allocation0]]
  $region98: #{tpu_custom_call.1} parent=0
    _
  %s14 = ssub.s32 1, %s12
  %s15 = scalar_select 0, %s14, %s12
  $region1: #{tpu_custom_call.1} parent=0
    #allocation2 [shape = 'u8[8192]{0}', space=vmem, size = 0x2000, scoped, tag = 'input window, operand 0, single buffered']
    #allocation3 [shape = 's32[1]{0}', space=sflag, size = 0x4, scoped, tag = 'scoped memory for tpu_custom_call.1']
    #allocation4 [shape = 's32[1]{0}', space=sflag, size = 0x4, scoped, tag = 'scoped memory for tpu_custom_call.1']
    #allocation5 [shape = 'u8[8192]{0}', space=vmem, size = 0x2000, scoped, tag = 'input window, operand 1, single buffered']
    #allocation6 [shape = 's32[1]{0}', space=sflag, size = 0x4, scoped, tag = 'scoped memory for tpu_custom_call.1']
    #allocation7 [shape = 'u8[8192]{0}', space=vmem, size = 0x2000, scoped, tag = 'input window, operand 2, single buffered']
    #allocation8 [shape = 'u8[32768]{0}', space=vmem, size = 0x8000, scoped, tag = 'input window, operand 3, single buffered']
    #allocation9 [shape = 's32[1]{0}', space=sflag, size = 0x4, scoped, tag = 'scoped memory for tpu_custom_call.1']
    #allocation10 [shape = 'u8[32768]{0}', space=vmem, size = 0x8000, scoped, tag = 'input window, operand 4, single buffered']
    #allocation11 [shape = 'u8[32768]{0}', space=vmem, size = 0x8000, scoped, tag = 'input window, operand 5, single buffered']
    #allocation12 [shape = 's32[1]{0}', space=sflag, size = 0x4, scoped, tag = 'scoped memory for tpu_custom_call.1']
    #allocation13 [shape = 'u8[32768]{0}', space=vmem, size = 0x8000, scoped, tag = 'input window, operand 6, single buffered']
    #allocation14 [shape = 'u8[512]{0}', space=vmem, size = 0x400, scoped, tag = 'input window, operand 7, single buffered']
    #allocation15 [shape = 's32[1]{0}', space=sflag, size = 0x4, scoped, tag = 'scoped memory for tpu_custom_call.1']
    #allocation16 [shape = 'u8[512]{0}', space=vmem, size = 0x400, scoped, tag = 'input window, operand 8, single buffered']
    #allocation17 [shape = 'u8[512]{0}', space=vmem, size = 0x400, scoped, tag = 'input window, operand 9, single buffered']
    #allocation18 [shape = 's32[1]{0}', space=sflag, size = 0x4, scoped, tag = 'scoped memory for tpu_custom_call.1']
    #allocation19 [shape = 'u8[512]{0}', space=vmem, size = 0x400, scoped, tag = 'input window, operand 10, single buffered']
    #allocation20 [shape = 'u8[8192]{0}', space=vmem, size = 0x2000, scoped, tag = 'output window, operand 0, single buffered']
    %16 = vsyncpa [#allocation3], 0
    %17 = vsyncpa [#allocation6], 0
    %18 = vsyncpa [#allocation9], 0
    %19 = vsyncpa [#allocation12], 0
    %20 = vsyncpa [#allocation15], 0
    %21 = vsyncpa [#allocation18], 0
    %22 = vsyncpa [#allocation4], 0
    // Predicated region
    $region2: #{tpu_custom_call.1} parent=1 // pred_check
      _
    $region3: #{tpu_custom_call.1} parent=1 // pred_check_branch
      %24 = sbr.rel (0) target = $region5
    $region4: #{tpu_custom_call.1} parent=1 // pred_region
      %s26 = ssub.s32 256, 256
      %27 = vsyncadd [#allocation3], %s26
      %s28 = sshll.u32 [#allocation2], 4
      %s29 = int_to_ptr.vmem [resolvable:$true] %s28
      %34 = dma.hbm_to_vmem [thread:$0]  %s0, 256, %s29, [#allocation3], 128, 128, 8
    $region5: #{tpu_custom_call.1} parent=1 // pred_fallthru
      _
    // Predicated region
    $region6: #{tpu_custom_call.1} parent=1 // pred_check
      _
    $region7: #{tpu_custom_call.1} parent=1 // pred_check_branch
      %36 = sbr.rel (0) target = $region9
    $region8: #{tpu_custom_call.1} parent=1 // pred_region
      %s38 = ssub.s32 256, 256
      %39 = vsyncadd [#allocation6], %s38
      %s40 = sshll.u32 [#allocation5], 4
      %s41 = int_to_ptr.vmem [resolvable:$true] %s40
      %46 = dma.hbm_to_vmem [thread:$0]  %s1, 256, %s41, [#allocation6], 128, 128, 8
    $region9: #{tpu_custom_call.1} parent=1 // pred_fallthru
      _
    // Predicated region
    $region10: #{tpu_custom_call.1} parent=1 // pred_check
      _
    $region11: #{tpu_custom_call.1} parent=1 // pred_check_branch
      %48 = sbr.rel (0) target = $region13
    $region12: #{tpu_custom_call.1} parent=1 // pred_region
      %s50 = ssub.s32 256, 256
      %51 = vsyncadd [#allocation6], %s50
      %s52 = sshll.u32 [#allocation7], 4
      %s53 = int_to_ptr.vmem [resolvable:$true] %s52
      %58 = dma.hbm_to_vmem [thread:$0]  %s2, 256, %s53, [#allocation6], 128, 128, 8
    $region13: #{tpu_custom_call.1} parent=1 // pred_fallthru
      _
    // Predicated region
    $region14: #{tpu_custom_call.1} parent=1 // pred_check
      _
    $region15: #{tpu_custom_call.1} parent=1 // pred_check_branch
      %60 = sbr.rel (0) target = $region17
    $region16: #{tpu_custom_call.1} parent=1 // pred_region
      %s62 = ssub.s32 1024, 1024
      %63 = vsyncadd [#allocation9], %s62
      %s64 = sshll.u32 [#allocation8], 4
      %s65 = int_to_ptr.vmem [resolvable:$true] %s64
      %70 = dma.hbm_to_vmem [thread:$0]  %s3, 1024, %s65, [#allocation9], 64, 64, 4
    $region17: #{tpu_custom_call.1} parent=1 // pred_fallthru
      _
    // Predicated region
    $region18: #{tpu_custom_call.1} parent=1 // pred_check
      _
    $region19: #{tpu_custom_call.1} parent=1 // pred_check_branch
      %72 = sbr.rel (0) target = $region21
    $region20: #{tpu_custom_call.1} parent=1 // pred_region
      %s74 = ssub.s32 1024, 1024
      %75 = vsyncadd [#allocation9], %s74
      %s76 = sshll.u32 [#allocation10], 4
      %s77 = int_to_ptr.vmem [resolvable:$true] %s76
      %82 = dma.hbm_to_vmem [thread:$0]  %s4, 1024, %s77, [#allocation9], 64, 64, 4
    $region21: #{tpu_custom_call.1} parent=1 // pred_fallthru
      _
    // Predicated region
    $region22: #{tpu_custom_call.1} parent=1 // pred_check
      _
    $region23: #{tpu_custom_call.1} parent=1 // pred_check_branch
      %84 = sbr.rel (0) target = $region25
    $region24: #{tpu_custom_call.1} parent=1 // pred_region
      %s86 = ssub.s32 1024, 1024
      %87 = vsyncadd [#allocation12], %s86
      %s88 = sshll.u32 [#allocation11], 4
      %s89 = int_to_ptr.vmem [resolvable:$true] %s88
      %94 = dma.hbm_to_vmem [thread:$0]  %s5, 1024, %s89, [#allocation12], 64, 64, 4
    $region25: #{tpu_custom_call.1} parent=1 // pred_fallthru
      _
    // Predicated region
    $region26: #{tpu_custom_call.1} parent=1 // pred_check
      _
    $region27: #{tpu_custom_call.1} parent=1 // pred_check_branch
      %96 = sbr.rel (0) target = $region29
    $region28: #{tpu_custom_call.1} parent=1 // pred_region
      %s98 = ssub.s32 1024, 1024
      %99 = vsyncadd [#allocation12], %s98
      %s100 = sshll.u32 [#allocation13], 4
      %s101 = int_to_ptr.vmem [resolvable:$true] %s100
      %106 = dma.hbm_to_vmem [thread:$0]  %s6, 1024, %s101, [#allocation12], 64, 64, 4
    $region29: #{tpu_custom_call.1} parent=1 // pred_fallthru
      _
    // Predicated region
    $region30: #{tpu_custom_call.1} parent=1 // pred_check
      _
    $region31: #{tpu_custom_call.1} parent=1 // pred_check_branch
      %108 = sbr.rel (0) target = $region33
    $region32: #{tpu_custom_call.1} parent=1 // pred_region
      %s110 = ssub.s32 16, 16
      %111 = vsyncadd [#allocation15], %s110
      %s113 = sshll.u32 [#allocation14], 4
      %s114 = int_to_ptr.vmem [resolvable:$true] %s113
      %116 = dma.hbm_to_vmem [thread:$0]  %s7, 16, %s114, [#allocation15]
    $region33: #{tpu_custom_call.1} parent=1 // pred_fallthru
      _
    // Predicated region
    $region34: #{tpu_custom_call.1} parent=1 // pred_check
      _
    $region35: #{tpu_custom_call.1} parent=1 // pred_check_branch
      %118 = sbr.rel (0) target = $region37
    $region36: #{tpu_custom_call.1} parent=1 // pred_region
      %s120 = ssub.s32 16, 16
      %121 = vsyncadd [#allocation15], %s120
      %s123 = sshll.u32 [#allocation16], 4
      %s124 = int_to_ptr.vmem [resolvable:$true] %s123
      %126 = dma.hbm_to_vmem [thread:$0]  %s8, 16, %s124, [#allocation15]
    $region37: #{tpu_custom_call.1} parent=1 // pred_fallthru
      _
    // Predicated region
    $region38: #{tpu_custom_call.1} parent=1 // pred_check
      _
    $region39: #{tpu_custom_call.1} parent=1 // pred_check_branch
      %128 = sbr.rel (0) target = $region41
    $region40: #{tpu_custom_call.1} parent=1 // pred_region
      %s130 = ssub.s32 16, 16
      %131 = vsyncadd [#allocation18], %s130
      %s133 = sshll.u32 [#allocation17], 4
      %s134 = int_to_ptr.vmem [resolvable:$true] %s133
      %136 = dma.hbm_to_vmem [thread:$0]  %s9, 16, %s134, [#allocation18]
    $region41: #{tpu_custom_call.1} parent=1 // pred_fallthru
      _
    // Predicated region
    $region42: #{tpu_custom_call.1} parent=1 // pred_check
      _
    $region43: #{tpu_custom_call.1} parent=1 // pred_check_branch
      %138 = sbr.rel (0) target = $region45
    $region44: #{tpu_custom_call.1} parent=1 // pred_region
      %s140 = ssub.s32 16, 16
      %141 = vsyncadd [#allocation18], %s140
      %s143 = sshll.u32 [#allocation19], 4
      %s144 = int_to_ptr.vmem [resolvable:$true] %s143
      %146 = dma.hbm_to_vmem [thread:$0]  %s10, 16, %s144, [#allocation18]
    $region45: #{tpu_custom_call.1} parent=1 // pred_fallthru
      _
    // Predicated region
    $region46: #{tpu_custom_call.1} parent=1 // pred_check
      _
    $region47: #{tpu_custom_call.1} parent=1 // pred_check_branch
      %148 = sbr.rel (0) target = $region49
    $region48: #{tpu_custom_call.1} parent=1 // pred_region
      %149 = dma.done [#allocation3], 256
    $region49: #{tpu_custom_call.1} parent=1 // pred_fallthru
      _
    // Predicated region
    $region50: #{tpu_custom_call.1} parent=1 // pred_check
      _
    $region51: #{tpu_custom_call.1} parent=1 // pred_check_branch
      %151 = sbr.rel (0) target = $region53
    $region52: #{tpu_custom_call.1} parent=1 // pred_region
      %152 = dma.done [#allocation6], 256
    $region53: #{tpu_custom_call.1} parent=1 // pred_fallthru
      _
    // Predicated region
    $region54: #{tpu_custom_call.1} parent=1 // pred_check
      _
    $region55: #{tpu_custom_call.1} parent=1 // pred_check_branch
      %154 = sbr.rel (0) target = $region57
    $region56: #{tpu_custom_call.1} parent=1 // pred_region
      %155 = dma.done [#allocation6], 256
    $region57: #{tpu_custom_call.1} parent=1 // pred_fallthru
      _
    // Predicated region
    $region58: #{tpu_custom_call.1} parent=1 // pred_check
      _
    $region59: #{tpu_custom_call.1} parent=1 // pred_check_branch
      %157 = sbr.rel (0) target = $region61
    $region60: #{tpu_custom_call.1} parent=1 // pred_region
      %158 = dma.done [#allocation9], 1024
    $region61: #{tpu_custom_call.1} parent=1 // pred_fallthru
      _
    // Predicated region
    $region62: #{tpu_custom_call.1} parent=1 // pred_check
      _
    $region63: #{tpu_custom_call.1} parent=1 // pred_check_branch
      %160 = sbr.rel (0) target = $region65
    $region64: #{tpu_custom_call.1} parent=1 // pred_region
      %161 = dma.done [#allocation9], 1024
    $region65: #{tpu_custom_call.1} parent=1 // pred_fallthru
      _
    // Predicated region
    $region66: #{tpu_custom_call.1} parent=1 // pred_check
      _
    $region67: #{tpu_custom_call.1} parent=1 // pred_check_branch
      %163 = sbr.rel (0) target = $region69
    $region68: #{tpu_custom_call.1} parent=1 // pred_region
      %164 = dma.done [#allocation12], 1024
    $region69: #{tpu_custom_call.1} parent=1 // pred_fallthru
      _
    // Predicated region
    $region70: #{tpu_custom_call.1} parent=1 // pred_check
      _
    $region71: #{tpu_custom_call.1} parent=1 // pred_check_branch
      %166 = sbr.rel (0) target = $region73
    $region72: #{tpu_custom_call.1} parent=1 // pred_region
      %167 = dma.done [#allocation12], 1024
    $region73: #{tpu_custom_call.1} parent=1 // pred_fallthru
      _
    // Predicated region
    $region74: #{tpu_custom_call.1} parent=1 // pred_check
      _
    $region75: #{tpu_custom_call.1} parent=1 // pred_check_branch
      %169 = sbr.rel (0) target = $region77
    $region76: #{tpu_custom_call.1} parent=1 // pred_region
      %170 = dma.done [#allocation15], 16
    $region77: #{tpu_custom_call.1} parent=1 // pred_fallthru
      _
    // Predicated region
    $region78: #{tpu_custom_call.1} parent=1 // pred_check
      _
    $region79: #{tpu_custom_call.1} parent=1 // pred_check_branch
      %172 = sbr.rel (0) target = $region81
    $region80: #{tpu_custom_call.1} parent=1 // pred_region
      %173 = dma.done [#allocation15], 16
    $region81: #{tpu_custom_call.1} parent=1 // pred_fallthru
      _
    // Predicated region
    $region82: #{tpu_custom_call.1} parent=1 // pred_check
      _
    $region83: #{tpu_custom_call.1} parent=1 // pred_check_branch
      %175 = sbr.rel (0) target = $region85
    $region84: #{tpu_custom_call.1} parent=1 // pred_region
      %176 = dma.done [#allocation18], 16
    $region85: #{tpu_custom_call.1} parent=1 // pred_fallthru
      _
    // Predicated region
    $region86: #{tpu_custom_call.1} parent=1 // pred_check
      _
    $region87: #{tpu_custom_call.1} parent=1 // pred_check_branch
      %178 = sbr.rel (0) target = $region89
    $region88: #{tpu_custom_call.1} parent=1 // pred_region
      %179 = dma.done [#allocation18], 16
    $region89: #{tpu_custom_call.1} parent=1 // pred_fallthru
      _
    %v181 = vld [vmem:[#allocation2] sm:$0xff]
    %v182 = vld [vmem:[#allocation2 + $0x8] sm:$0xff]
    %v183 = vpack.c.bf16 %v182, %v181
    %v184 = vld [vmem:[#allocation5] sm:$0xff]
    %v185 = vld [vmem:[#allocation5 + $0x8] sm:$0xff]
    %v186 = vpack.c.bf16 %v185, %v184
    %v187 = vld [vmem:[#allocation7] sm:$0xff]
    %v188 = vld [vmem:[#allocation7 + $0x8] sm:$0xff]
    %v189 = vpack.c.bf16 %v188, %v187
    %v190 = vld [vmem:[#allocation8] sm:$0xf]
    %v191 = vld [vmem:[#allocation8 + $0x4] sm:$0xf]
    %v192 = vld [vmem:[#allocation8 + $0x8] sm:$0xf]
    %v193 = vld [vmem:[#allocation8 + $0xc] sm:$0xf]
    %v194 = vld [vmem:[#allocation8 + $0x10] sm:$0xf]
    %v195 = vld [vmem:[#allocation8 + $0x14] sm:$0xf]
    %v196 = vld [vmem:[#allocation8 + $0x18] sm:$0xf]
    %v197 = vld [vmem:[#allocation8 + $0x1c] sm:$0xf]
    %v198 = vld [vmem:[#allocation8 + $0x20] sm:$0xf]
    %v199 = vld [vmem:[#allocation8 + $0x24] sm:$0xf]
    %v200 = vld [vmem:[#allocation8 + $0x28] sm:$0xf]
    %v201 = vld [vmem:[#allocation8 + $0x2c] sm:$0xf]
    %v202 = vld [vmem:[#allocation8 + $0x30] sm:$0xf]
    %v203 = vld [vmem:[#allocation8 + $0x34] sm:$0xf]
    %v204 = vld [vmem:[#allocation8 + $0x38] sm:$0xf]
    %v205 = vld [vmem:[#allocation8 + $0x3c] sm:$0xf]
    %v206 = vld [vmem:[#allocation14] sm:$0x1]
    %v208 = vlaneseq
    %v209 = vshrl.u32 %v208, 7
    %v210 = vsub.s32 0, %v209
    %v211 = vrot.slane %v206, %v210
    %v229 = vunpack.c.l.b16 %v190
    %v230 = vunpack.c.l.b16 %v191
    %v231 = vunpack.c.l.b16 %v192
    %v232 = vunpack.c.l.b16 %v193
    %v233 = vunpack.c.l.b16 %v194
    %v234 = vunpack.c.l.b16 %v195
    %v235 = vunpack.c.l.b16 %v196
    %v236 = vunpack.c.l.b16 %v197
    %v237 = vunpack.c.l.b16 %v198
    %v238 = vunpack.c.l.b16 %v199
    %v239 = vunpack.c.l.b16 %v200
    %v240 = vunpack.c.l.b16 %v201
    %v241 = vunpack.c.l.b16 %v202
    %v242 = vunpack.c.l.b16 %v203
    %v243 = vunpack.c.l.b16 %v204
    %v244 = vunpack.c.l.b16 %v205
    %v245 = vpack.c.b16 %v230, %v229
    %v246 = vpack.c.b16 %v232, %v231
    %v247 = vpack.c.b16 %v234, %v233
    %v248 = vpack.c.b16 %v236, %v235
    %v249 = vpack.c.b16 %v238, %v237
    %v250 = vpack.c.b16 %v240, %v239
    %v251 = vpack.c.b16 %v242, %v241
    %v252 = vpack.c.b16 %v244, %v243
    %261 = vmatprep.subr.bf16.mxu0 0
    %262 = vmatpush1.bf16.msra.mxu0 %v245
    %263 = vmatprep.subr.bf16.mxu0 0
    %264 = vmatpush1.bf16.msra.mxu0 %v246
    %265 = vmatprep.subr.bf16.mxu0 0
    %266 = vmatpush1.bf16.msra.mxu0 %v247
    %267 = vmatprep.subr.bf16.mxu0 0
    %268 = vmatpush1.bf16.msra.mxu0 %v248
    %269 = vmatprep.subr.bf16.mxu0 0
    %270 = vmatpush1.bf16.msra.mxu0 %v249
    %271 = vmatprep.subr.bf16.mxu0 0
    %272 = vmatpush1.bf16.msra.mxu0 %v250
    %273 = vmatprep.subr.bf16.mxu0 0
    %274 = vmatpush1.bf16.msra.mxu0 %v251
    %275 = vmatprep.subr.bf16.mxu0 0
    %276 = vmatpush1.bf16.msra.mxu0 %v252
    %277 = vmatprep.subr.bf16.mxu0 0
    %278 = vmatpush1.bf16.msra.mxu0 0
    %279 = vmatprep.subr.bf16.mxu0 0
    %280 = vmatpush1.bf16.msra.mxu0 0
    %281 = vmatprep.subr.bf16.mxu0 0
    %282 = vmatpush1.bf16.msra.mxu0 0
    %283 = vmatprep.subr.bf16.mxu0 0
    %284 = vmatpush1.bf16.msra.mxu0 0
    %285 = vmatprep.subr.bf16.mxu0 0
    %286 = vmatpush1.bf16.msra.mxu0 0
    %287 = vmatprep.subr.bf16.mxu0 0
    %288 = vmatpush1.bf16.msra.mxu0 0
    %289 = vmatprep.subr.bf16.mxu0 0
    %290 = vmatpush1.bf16.msra.mxu0 0
    %291 = vmatprep.subr.bf16.mxu0 0
    %292 = vmatpush1.bf16.msra.mxu0 0
    %293 = vmatprep.mubr.bf16.mxu0 0
    %294 = vmatmul.mubr.bf16.gmra.mrb[0].mxu0 %v183
    %v295 = vpop.f32.mrb[0].mxu0
    %v296 = vadd.f32 %v211, %v295
    %v297 = vpop.f32.mrb[0].mxu0
    %v298 = vpop.f32.mrb[0].mxu0
    %v299 = vadd.f32 %v211, %v298
    %v300 = vpop.f32.mrb[0].mxu0
    %301 = vdwg.mxu0
    %v302 = vld [vmem:[#allocation10] sm:$0xf]
    %v303 = vld [vmem:[#allocation10 + $0x4] sm:$0xf]
    %v304 = vld [vmem:[#allocation10 + $0x8] sm:$0xf]
    %v305 = vld [vmem:[#allocation10 + $0xc] sm:$0xf]
    %v306 = vld [vmem:[#allocation10 + $0x10] sm:$0xf]
    %v307 = vld [vmem:[#allocation10 + $0x14] sm:$0xf]
    %v308 = vld [vmem:[#allocation10 + $0x18] sm:$0xf]
    %v309 = vld [vmem:[#allocation10 + $0x1c] sm:$0xf]
    %v310 = vld [vmem:[#allocation10 + $0x20] sm:$0xf]
    %v311 = vld [vmem:[#allocation10 + $0x24] sm:$0xf]
    %v312 = vld [vmem:[#allocation10 + $0x28] sm:$0xf]
    %v313 = vld [vmem:[#allocation10 + $0x2c] sm:$0xf]
    %v314 = vld [vmem:[#allocation10 + $0x30] sm:$0xf]
    %v315 = vld [vmem:[#allocation10 + $0x34] sm:$0xf]
    %v316 = vld [vmem:[#allocation10 + $0x38] sm:$0xf]
    %v317 = vld [vmem:[#allocation10 + $0x3c] sm:$0xf]
    %v318 = vld [vmem:[#allocation16] sm:$0x1]
    %v320 = vlaneseq
    %v321 = vshrl.u32 %v320, 7
    %v322 = vsub.s32 0, %v321
    %v323 = vrot.slane %v318, %v322
    %v341 = vunpack.c.l.b16 %v302
    %v342 = vunpack.c.l.b16 %v303
    %v343 = vunpack.c.l.b16 %v304
    %v344 = vunpack.c.l.b16 %v305
    %v345 = vunpack.c.l.b16 %v306
    %v346 = vunpack.c.l.b16 %v307
    %v347 = vunpack.c.l.b16 %v308
    %v348 = vunpack.c.l.b16 %v309
    %v349 = vunpack.c.l.b16 %v310
    %v350 = vunpack.c.l.b16 %v311
    %v351 = vunpack.c.l.b16 %v312
    %v352 = vunpack.c.l.b16 %v313
    %v353 = vunpack.c.l.b16 %v314
    %v354 = vunpack.c.l.b16 %v315
    %v355 = vunpack.c.l.b16 %v316
    %v356 = vunpack.c.l.b16 %v317
    %v357 = vpack.c.b16 %v342, %v341
    %v358 = vpack.c.b16 %v344, %v343
    %v359 = vpack.c.b16 %v346, %v345
    %v360 = vpack.c.b16 %v348, %v347
    %v361 = vpack.c.b16 %v350, %v349
    %v362 = vpack.c.b16 %v352, %v351
    %v363 = vpack.c.b16 %v354, %v353
    %v364 = vpack.c.b16 %v356, %v355
    %373 = vmatprep.subr.bf16.mxu0 0
    %374 = vmatpush1.bf16.msra.mxu0 %v357
    %375 = vmatprep.subr.bf16.mxu0 0
    %376 = vmatpush1.bf16.msra.mxu0 %v358
    %377 = vmatprep.subr.bf16.mxu0 0
    %378 = vmatpush1.bf16.msra.mxu0 %v359
    %379 = vmatprep.subr.bf16.mxu0 0
    %380 = vmatpush1.bf16.msra.mxu0 %v360
    %381 = vmatprep.subr.bf16.mxu0 0
    %382 = vmatpush1.bf16.msra.mxu0 %v361
    %383 = vmatprep.subr.bf16.mxu0 0
    %384 = vmatpush1.bf16.msra.mxu0 %v362
    %385 = vmatprep.subr.bf16.mxu0 0
    %386 = vmatpush1.bf16.msra.mxu0 %v363
    %387 = vmatprep.subr.bf16.mxu0 0
    %388 = vmatpush1.bf16.msra.mxu0 %v364
    %389 = vmatprep.subr.bf16.mxu0 0
    %390 = vmatpush1.bf16.msra.mxu0 0
    %391 = vmatprep.subr.bf16.mxu0 0
    %392 = vmatpush1.bf16.msra.mxu0 0
    %393 = vmatprep.subr.bf16.mxu0 0
    %394 = vmatpush1.bf16.msra.mxu0 0
    %395 = vmatprep.subr.bf16.mxu0 0
    %396 = vmatpush1.bf16.msra.mxu0 0
    %397 = vmatprep.subr.bf16.mxu0 0
    %398 = vmatpush1.bf16.msra.mxu0 0
    %399 = vmatprep.subr.bf16.mxu0 0
    %400 = vmatpush1.bf16.msra.mxu0 0
    %401 = vmatprep.subr.bf16.mxu0 0
    %402 = vmatpush1.bf16.msra.mxu0 0
    %403 = vmatprep.subr.bf16.mxu0 0
    %404 = vmatpush1.bf16.msra.mxu0 0
    %405 = vmatprep.mubr.bf16.mxu0 0
    %406 = vmatmul.mubr.bf16.gmra.mrb[0].mxu0 %v186
    %v407 = vpop.f32.mrb[0].mxu0
    %v408 = vadd.f32 %v323, %v407
    %v409 = vpop.f32.mrb[0].mxu0
    %v410 = vpop.f32.mrb[0].mxu0
    %v411 = vadd.f32 %v323, %v410
    %v412 = vpop.f32.mrb[0].mxu0
    %413 = vdwg.mxu0
    %v414 = vld [vmem:[#allocation11] sm:$0xf]
    %v415 = vld [vmem:[#allocation11 + $0x4] sm:$0xf]
    %v416 = vld [vmem:[#allocation11 + $0x8] sm:$0xf]
    %v417 = vld [vmem:[#allocation11 + $0xc] sm:$0xf]
    %v418 = vld [vmem:[#allocation11 + $0x10] sm:$0xf]
    %v419 = vld [vmem:[#allocation11 + $0x14] sm:$0xf]
    %v420 = vld [vmem:[#allocation11 + $0x18] sm:$0xf]
    %v421 = vld [vmem:[#allocation11 + $0x1c] sm:$0xf]
    %v422 = vld [vmem:[#allocation11 + $0x20] sm:$0xf]
    %v423 = vld [vmem:[#allocation11 + $0x24] sm:$0xf]
    %v424 = vld [vmem:[#allocation11 + $0x28] sm:$0xf]
    %v425 = vld [vmem:[#allocation11 + $0x2c] sm:$0xf]
    %v426 = vld [vmem:[#allocation11 + $0x30] sm:$0xf]
    %v427 = vld [vmem:[#allocation11 + $0x34] sm:$0xf]
    %v428 = vld [vmem:[#allocation11 + $0x38] sm:$0xf]
    %v429 = vld [vmem:[#allocation11 + $0x3c] sm:$0xf]
    %v430 = vld [vmem:[#allocation17] sm:$0x1]
    %v432 = vlaneseq
    %v433 = vshrl.u32 %v432, 7
    %v434 = vsub.s32 0, %v433
    %v435 = vrot.slane %v430, %v434
    %v453 = vunpack.c.l.b16 %v414
    %v454 = vunpack.c.l.b16 %v415
    %v455 = vunpack.c.l.b16 %v416
    %v456 = vunpack.c.l.b16 %v417
    %v457 = vunpack.c.l.b16 %v418
    %v458 = vunpack.c.l.b16 %v419
    %v459 = vunpack.c.l.b16 %v420
    %v460 = vunpack.c.l.b16 %v421
    %v461 = vunpack.c.l.b16 %v422
    %v462 = vunpack.c.l.b16 %v423
    %v463 = vunpack.c.l.b16 %v424
    %v464 = vunpack.c.l.b16 %v425
    %v465 = vunpack.c.l.b16 %v426
    %v466 = vunpack.c.l.b16 %v427
    %v467 = vunpack.c.l.b16 %v428
    %v468 = vunpack.c.l.b16 %v429
    %v469 = vpack.c.b16 %v454, %v453
    %v470 = vpack.c.b16 %v456, %v455
    %v471 = vpack.c.b16 %v458, %v457
    %v472 = vpack.c.b16 %v460, %v459
    %v473 = vpack.c.b16 %v462, %v461
    %v474 = vpack.c.b16 %v464, %v463
    %v475 = vpack.c.b16 %v466, %v465
    %v476 = vpack.c.b16 %v468, %v467
    %485 = vmatprep.subr.bf16.mxu0 0
    %486 = vmatpush1.bf16.msra.mxu0 %v469
    %487 = vmatprep.subr.bf16.mxu0 0
    %488 = vmatpush1.bf16.msra.mxu0 %v470
    %489 = vmatprep.subr.bf16.mxu0 0
    %490 = vmatpush1.bf16.msra.mxu0 %v471
    %491 = vmatprep.subr.bf16.mxu0 0
    %492 = vmatpush1.bf16.msra.mxu0 %v472
    %493 = vmatprep.subr.bf16.mxu0 0
    %494 = vmatpush1.bf16.msra.mxu0 %v473
    %495 = vmatprep.subr.bf16.mxu0 0
    %496 = vmatpush1.bf16.msra.mxu0 %v474
    %497 = vmatprep.subr.bf16.mxu0 0
    %498 = vmatpush1.bf16.msra.mxu0 %v475
    %499 = vmatprep.subr.bf16.mxu0 0
    %500 = vmatpush1.bf16.msra.mxu0 %v476
    %501 = vmatprep.subr.bf16.mxu0 0
    %502 = vmatpush1.bf16.msra.mxu0 0
    %503 = vmatprep.subr.bf16.mxu0 0
    %504 = vmatpush1.bf16.msra.mxu0 0
    %505 = vmatprep.subr.bf16.mxu0 0
    %506 = vmatpush1.bf16.msra.mxu0 0
    %507 = vmatprep.subr.bf16.mxu0 0
    %508 = vmatpush1.bf16.msra.mxu0 0
    %509 = vmatprep.subr.bf16.mxu0 0
    %510 = vmatpush1.bf16.msra.mxu0 0
    %511 = vmatprep.subr.bf16.mxu0 0
    %512 = vmatpush1.bf16.msra.mxu0 0
    %513 = vmatprep.subr.bf16.mxu0 0
    %514 = vmatpush1.bf16.msra.mxu0 0
    %515 = vmatprep.subr.bf16.mxu0 0
    %516 = vmatpush1.bf16.msra.mxu0 0
    %517 = vmatprep.mubr.bf16.mxu0 0
    %518 = vmatmul.mubr.bf16.gmra.mrb[0].mxu0 %v189
    %v519 = vpop.f32.mrb[0].mxu0
    %v520 = vadd.f32 %v435, %v519
    %v521 = vpop.f32.mrb[0].mxu0
    %v522 = vpop.f32.mrb[0].mxu0
    %v523 = vadd.f32 %v435, %v522
    %v524 = vpop.f32.mrb[0].mxu0
    %525 = vdwg.mxu0
    %v526 = vpack.c.bf16 %v299, %v296
    %v527 = vpack.c.bf16 %v411, %v408
    %v528 = vpack.c.bf16 %v523, %v520
    %v529 = vld [vmem:[#allocation13] sm:$0xf]
    %v530 = vld [vmem:[#allocation13 + $0x4] sm:$0xf]
    %v531 = vld [vmem:[#allocation13 + $0x8] sm:$0xf]
    %v532 = vld [vmem:[#allocation13 + $0xc] sm:$0xf]
    %v533 = vld [vmem:[#allocation19] sm:$0x1]
    %vm534 = vcmask 64512
    %v536 = vsel %vm534, %v526, 0
    %v539 = vsel %vm534, %v527, 0
    %541 = vmatprep.subr.bf16.mxu0 0
    %542 = vmatpush1.bf16.xpose.msra.mxu0 %v539
    %543 = vmatprep.subr.bf16.mxu0 0
    %544 = vmatpush1.bf16.xpose.msra.mxu0 0
    %545 = vmatprep.subr.bf16.mxu0 0
    %546 = vmatpush1.bf16.xpose.msra.mxu0 0
    %547 = vmatprep.subr.bf16.mxu0 0
    %548 = vmatpush1.bf16.xpose.msra.mxu0 0
    %549 = vmatprep.subr.bf16.mxu0 0
    %550 = vmatpush1.bf16.xpose.msra.mxu0 0
    %551 = vmatprep.subr.bf16.mxu0 0
    %552 = vmatpush1.bf16.xpose.msra.mxu0 0
    %553 = vmatprep.subr.bf16.mxu0 0
    %554 = vmatpush1.bf16.xpose.msra.mxu0 0
    %555 = vmatprep.subr.bf16.mxu0 0
    %556 = vmatpush1.bf16.xpose.msra.mxu0 0
    %557 = vmatprep.subr.bf16.mxu0 0
    %558 = vmatpush1.bf16.xpose.msra.mxu0 0
    %559 = vmatprep.subr.bf16.mxu0 0
    %560 = vmatpush1.bf16.xpose.msra.mxu0 0
    %561 = vmatprep.subr.bf16.mxu0 0
    %562 = vmatpush1.bf16.xpose.msra.mxu0 0
    %563 = vmatprep.subr.bf16.mxu0 0
    %564 = vmatpush1.bf16.xpose.msra.mxu0 0
    %565 = vmatprep.subr.bf16.mxu0 0
    %566 = vmatpush1.bf16.xpose.msra.mxu0 0
    %567 = vmatprep.subr.bf16.mxu0 0
    %568 = vmatpush1.bf16.xpose.msra.mxu0 0
    %569 = vmatprep.subr.bf16.mxu0 0
    %570 = vmatpush1.bf16.xpose.msra.mxu0 0
    %571 = vmatprep.subr.bf16.mxu0 0
    %572 = vmatpush1.bf16.xpose.msra.mxu0 0
    %573 = vmatprep.mubr.bf16.mxu0 0
    %574 = vmatmul.mubr.bf16.gmra.mrb[0].mxu0 %v536
    %v575 = vpop.f32.mrb[0].mxu0
    %v576 = vadd.f32 0.0, %v575
    %v577 = vpop.f32.mrb[0].mxu0
    %v578 = vpop.f32.mrb[0].mxu0
    %v579 = vpop.f32.mrb[0].mxu0
    %580 = vdwg.mxu0
    %v581 = vsel %vm534, %v576, -inf
    %582 = vmax.xlane.f32.xlu0 %v581
    %v583 = vpop.xlane.xlu0 %582
    %v584 = vsub.f32 %v576, %v583
    %v585 = vmul.f32 %v584, 1.442695
    %v586 = vpow.pop %v585
    %v587 = vsel %vm534, %v586, 0.0
    %588 = vadd.xlane.f32.xlu0 %v587
    %v589 = vpop.xlane.xlu0 %588
    %v590 = vpack.c.bf16 %v586, %v586
    %v592 = vsel %vm534, %v590, 0
    %vm594 = vcmask 1043456
    %v596 = vsel %vm594, %v528, 0
    %598 = vmatprep.subr.bf16.mxu0 0
    %599 = vmatpush1.bf16.msra.mxu0 %v596
    %600 = vmatprep.subr.bf16.mxu0 0
    %601 = vmatpush1.bf16.msra.mxu0 0
    %602 = vmatprep.subr.bf16.mxu0 0
    %603 = vmatpush1.bf16.msra.mxu0 0
    %604 = vmatprep.subr.bf16.mxu0 0
    %605 = vmatpush1.bf16.msra.mxu0 0
    %606 = vmatprep.subr.bf16.mxu0 0
    %607 = vmatpush1.bf16.msra.mxu0 0
    %608 = vmatprep.subr.bf16.mxu0 0
    %609 = vmatpush1.bf16.msra.mxu0 0
    %610 = vmatprep.subr.bf16.mxu0 0
    %611 = vmatpush1.bf16.msra.mxu0 0
    %612 = vmatprep.subr.bf16.mxu0 0
    %613 = vmatpush1.bf16.msra.mxu0 0
    %614 = vmatprep.subr.bf16.mxu0 0
    %615 = vmatpush1.bf16.msra.mxu0 0
    %616 = vmatprep.subr.bf16.mxu0 0
    %617 = vmatpush1.bf16.msra.mxu0 0
    %618 = vmatprep.subr.bf16.mxu0 0
    %619 = vmatpush1.bf16.msra.mxu0 0
    %620 = vmatprep.subr.bf16.mxu0 0
    %621 = vmatpush1.bf16.msra.mxu0 0
    %622 = vmatprep.subr.bf16.mxu0 0
    %623 = vmatpush1.bf16.msra.mxu0 0
    %624 = vmatprep.subr.bf16.mxu0 0
    %625 = vmatpush1.bf16.msra.mxu0 0
    %626 = vmatprep.subr.bf16.mxu0 0
    %627 = vmatpush1.bf16.msra.mxu0 0
    %628 = vmatprep.subr.bf16.mxu0 0
    %629 = vmatpush1.bf16.msra.mxu0 0
    %630 = vmatprep.mubr.bf16.mxu0 0
    %631 = vmatmul.mubr.bf16.gmra.mrb[0].mxu0 %v592
    %v632 = vpop.f32.mrb[0].mxu0
    %v633 = vadd.f32 0.0, %v632
    %v634 = vpop.f32.mrb[0].mxu0
    %v635 = vpop.f32.mrb[0].mxu0
    %v636 = vpop.f32.mrb[0].mxu0
    %637 = vdwg.mxu0
    %v638 = vrcp.pop %v589
    %v639 = vmul.f32 %v633, %v638
    %v640 = vpack.c.bf16 %v639, %v639
    %642 = vrot.lane.b32.xlu0 %v526, 120
    %v643 = vpop.permute.xlu0 %642
    %645 = vrot.lane.b32.xlu0 %v527, 120
    %v646 = vpop.permute.xlu0 %645
    %v648 = vsel %vm534, %v643, 0
    %v651 = vsel %vm534, %v646, 0
    %653 = vmatprep.subr.bf16.mxu0 0
    %654 = vmatpush1.bf16.xpose.msra.mxu0 %v651
    %655 = vmatprep.subr.bf16.mxu0 0
    %656 = vmatpush1.bf16.xpose.msra.mxu0 0
    %657 = vmatprep.subr.bf16.mxu0 0
    %658 = vmatpush1.bf16.xpose.msra.mxu0 0
    %659 = vmatprep.subr.bf16.mxu0 0
    %660 = vmatpush1.bf16.xpose.msra.mxu0 0
    %661 = vmatprep.subr.bf16.mxu0 0
    %662 = vmatpush1.bf16.xpose.msra.mxu0 0
    %663 = vmatprep.subr.bf16.mxu0 0
    %664 = vmatpush1.bf16.xpose.msra.mxu0 0
    %665 = vmatprep.subr.bf16.mxu0 0
    %666 = vmatpush1.bf16.xpose.msra.mxu0 0
    %667 = vmatprep.subr.bf16.mxu0 0
    %668 = vmatpush1.bf16.xpose.msra.mxu0 0
    %669 = vmatprep.subr.bf16.mxu0 0
    %670 = vmatpush1.bf16.xpose.msra.mxu0 0
    %671 = vmatprep.subr.bf16.mxu0 0
    %672 = vmatpush1.bf16.xpose.msra.mxu0 0
    %673 = vmatprep.subr.bf16.mxu0 0
    %674 = vmatpush1.bf16.xpose.msra.mxu0 0
    %675 = vmatprep.subr.bf16.mxu0 0
    %676 = vmatpush1.bf16.xpose.msra.mxu0 0
    %677 = vmatprep.subr.bf16.mxu0 0
    %678 = vmatpush1.bf16.xpose.msra.mxu0 0
    %679 = vmatprep.subr.bf16.mxu0 0
    %680 = vmatpush1.bf16.xpose.msra.mxu0 0
    %681 = vmatprep.subr.bf16.mxu0 0
    %682 = vmatpush1.bf16.xpose.msra.mxu0 0
    %683 = vmatprep.subr.bf16.mxu0 0
    %684 = vmatpush1.bf16.xpose.msra.mxu0 0
    %685 = vmatprep.mubr.bf16.mxu0 0
    %686 = vmatmul.mubr.bf16.gmra.mrb[0].mxu0 %v648
    %v687 = vpop.f32.mrb[0].mxu0
    %v688 = vadd.f32 0.0, %v687
    %v689 = vpop.f32.mrb[0].mxu0
    %v690 = vpop.f32.mrb[0].mxu0
    %v691 = vpop.f32.mrb[0].mxu0
    %692 = vdwg.mxu0
    %v693 = vsel %vm534, %v688, -inf
    %694 = vmax.xlane.f32.xlu0 %v693
    %v695 = vpop.xlane.xlu0 %694
    %v696 = vsub.f32 %v688, %v695
    %v697 = vmul.f32 %v696, 1.442695
    %v698 = vpow.pop %v697
    %v699 = vsel %vm534, %v698, 0.0
    %700 = vadd.xlane.f32.xlu0 %v699
    %v701 = vpop.xlane.xlu0 %700
    %v702 = vpack.c.bf16 %v698, %v698
    %704 = vrot.lane.b32.xlu0 %v528, 120
    %v705 = vpop.permute.xlu0 %704
    %v707 = vsel %vm534, %v702, 0
    %v710 = vsel %vm594, %v705, 0
    %712 = vmatprep.subr.bf16.mxu0 0
    %713 = vmatpush1.bf16.msra.mxu0 %v710
    %714 = vmatprep.subr.bf16.mxu0 0
    %715 = vmatpush1.bf16.msra.mxu0 0
    %716 = vmatprep.subr.bf16.mxu0 0
    %717 = vmatpush1.bf16.msra.mxu0 0
    %718 = vmatprep.subr.bf16.mxu0 0
    %719 = vmatpush1.bf16.msra.mxu0 0
    %720 = vmatprep.subr.bf16.mxu0 0
    %721 = vmatpush1.bf16.msra.mxu0 0
    %722 = vmatprep.subr.bf16.mxu0 0
    %723 = vmatpush1.bf16.msra.mxu0 0
    %724 = vmatprep.subr.bf16.mxu0 0
    %725 = vmatpush1.bf16.msra.mxu0 0
    %726 = vmatprep.subr.bf16.mxu0 0
    %727 = vmatpush1.bf16.msra.mxu0 0
    %728 = vmatprep.subr.bf16.mxu0 0
    %729 = vmatpush1.bf16.msra.mxu0 0
    %730 = vmatprep.subr.bf16.mxu0 0
    %731 = vmatpush1.bf16.msra.mxu0 0
    %732 = vmatprep.subr.bf16.mxu0 0
    %733 = vmatpush1.bf16.msra.mxu0 0
    %734 = vmatprep.subr.bf16.mxu0 0
    %735 = vmatpush1.bf16.msra.mxu0 0
    %736 = vmatprep.subr.bf16.mxu0 0
    %737 = vmatpush1.bf16.msra.mxu0 0
    %738 = vmatprep.subr.bf16.mxu0 0
    %739 = vmatpush1.bf16.msra.mxu0 0
    %740 = vmatprep.subr.bf16.mxu0 0
    %741 = vmatpush1.bf16.msra.mxu0 0
    %742 = vmatprep.subr.bf16.mxu0 0
    %743 = vmatpush1.bf16.msra.mxu0 0
    %744 = vmatprep.mubr.bf16.mxu0 0
    %745 = vmatmul.mubr.bf16.gmra.mrb[0].mxu0 %v707
    %v746 = vpop.f32.mrb[0].mxu0
    %v747 = vadd.f32 0.0, %v746
    %v748 = vpop.f32.mrb[0].mxu0
    %v749 = vpop.f32.mrb[0].mxu0
    %v750 = vpop.f32.mrb[0].mxu0
    %751 = vdwg.mxu0
    %v752 = vrcp.pop %v701
    %v753 = vmul.f32 %v747, %v752
    %v754 = vpack.c.bf16 %v753, %v753
    %v756 = vsel %vm534, %v754, 0
    %v759 = vsel %vm594, %v530, 0
    %761 = vmatprep.subr.bf16.mxu0 0
    %762 = vmatpush1.bf16.msra.mxu0 %v759
    %763 = vmatprep.subr.bf16.mxu0 0
    %764 = vmatpush1.bf16.msra.mxu0 0
    %765 = vmatprep.subr.bf16.mxu0 0
    %766 = vmatpush1.bf16.msra.mxu0 0
    %767 = vmatprep.subr.bf16.mxu0 0
    %768 = vmatpush1.bf16.msra.mxu0 0
    %769 = vmatprep.subr.bf16.mxu0 0
    %770 = vmatpush1.bf16.msra.mxu0 0
    %771 = vmatprep.subr.bf16.mxu0 0
    %772 = vmatpush1.bf16.msra.mxu0 0
    %773 = vmatprep.subr.bf16.mxu0 0
    %774 = vmatpush1.bf16.msra.mxu0 0
    %775 = vmatprep.subr.bf16.mxu0 0
    %776 = vmatpush1.bf16.msra.mxu0 0
    %777 = vmatprep.subr.bf16.mxu0 0
    %778 = vmatpush1.bf16.msra.mxu0 0
    %779 = vmatprep.subr.bf16.mxu0 0
    %780 = vmatpush1.bf16.msra.mxu0 0
    %781 = vmatprep.subr.bf16.mxu0 0
    %782 = vmatpush1.bf16.msra.mxu0 0
    %783 = vmatprep.subr.bf16.mxu0 0
    %784 = vmatpush1.bf16.msra.mxu0 0
    %785 = vmatprep.subr.bf16.mxu0 0
    %786 = vmatpush1.bf16.msra.mxu0 0
    %787 = vmatprep.subr.bf16.mxu0 0
    %788 = vmatpush1.bf16.msra.mxu0 0
    %789 = vmatprep.subr.bf16.mxu0 0
    %790 = vmatpush1.bf16.msra.mxu0 0
    %791 = vmatprep.subr.bf16.mxu0 0
    %792 = vmatpush1.bf16.msra.mxu0 0
    %793 = vmatprep.mubr.bf16.mxu0 0
    %794 = vmatmul.mubr.bf16.gmra.mrb[0].mxu0 %v756
    %v795 = vpop.f32.mrb[0].mxu0
    %v796 = vadd.f32 0.0, %v795
    %v797 = vpop.f32.mrb[0].mxu0
    %v798 = vpop.f32.mrb[0].mxu0
    %v799 = vpop.f32.mrb[0].mxu0
    %800 = vdwg.mxu0
    %v802 = vsel %vm534, %v640, 0
    %v805 = vsel %vm594, %v529, 0
    %807 = vmatprep.subr.bf16.mxu0 0
    %808 = vmatpush1.bf16.msra.mxu0 %v805
    %809 = vmatprep.subr.bf16.mxu0 0
    %810 = vmatpush1.bf16.msra.mxu0 0
    %811 = vmatprep.subr.bf16.mxu0 0
    %812 = vmatpush1.bf16.msra.mxu0 0
    %813 = vmatprep.subr.bf16.mxu0 0
    %814 = vmatpush1.bf16.msra.mxu0 0
    %815 = vmatprep.subr.bf16.mxu0 0
    %816 = vmatpush1.bf16.msra.mxu0 0
    %817 = vmatprep.subr.bf16.mxu0 0
    %818 = vmatpush1.bf16.msra.mxu0 0
    %819 = vmatprep.subr.bf16.mxu0 0
    %820 = vmatpush1.bf16.msra.mxu0 0
    %821 = vmatprep.subr.bf16.mxu0 0
    %822 = vmatpush1.bf16.msra.mxu0 0
    %823 = vmatprep.subr.bf16.mxu0 0
    %824 = vmatpush1.bf16.msra.mxu0 0
    %825 = vmatprep.subr.bf16.mxu0 0
    %826 = vmatpush1.bf16.msra.mxu0 0
    %827 = vmatprep.subr.bf16.mxu0 0
    %828 = vmatpush1.bf16.msra.mxu0 0
    %829 = vmatprep.subr.bf16.mxu0 0
    %830 = vmatpush1.bf16.msra.mxu0 0
    %831 = vmatprep.subr.bf16.mxu0 0
    %832 = vmatpush1.bf16.msra.mxu0 0
    %833 = vmatprep.subr.bf16.mxu0 0
    %834 = vmatpush1.bf16.msra.mxu0 0
    %835 = vmatprep.subr.bf16.mxu0 0
    %836 = vmatpush1.bf16.msra.mxu0 0
    %837 = vmatprep.subr.bf16.mxu0 0
    %838 = vmatpush1.bf16.msra.mxu0 0
    %839 = vmatprep.mubr.bf16.mxu0 0
    %840 = vmatmul.mubr.bf16.gmra.mrb[0].mxu0 %v802
    %v841 = vpop.f32.mrb[0].mxu0
    %v842 = vadd.f32 %v796, %v841
    %v843 = vpop.f32.mrb[0].mxu0
    %v844 = vpop.f32.mrb[0].mxu0
    %v845 = vpop.f32.mrb[0].mxu0
    %846 = vdwg.mxu0
    %847 = vrot.lane.b32.xlu0 %v526, 112
    %v848 = vpop.permute.xlu0 %847
    %849 = vrot.lane.b32.xlu0 %v527, 112
    %v850 = vpop.permute.xlu0 %849
    %v852 = vsel %vm534, %v848, 0
    %v855 = vsel %vm534, %v850, 0
    %857 = vmatprep.subr.bf16.mxu0 0
    %858 = vmatpush1.bf16.xpose.msra.mxu0 %v855
    %859 = vmatprep.subr.bf16.mxu0 0
    %860 = vmatpush1.bf16.xpose.msra.mxu0 0
    %861 = vmatprep.subr.bf16.mxu0 0
    %862 = vmatpush1.bf16.xpose.msra.mxu0 0
    %863 = vmatprep.subr.bf16.mxu0 0
    %864 = vmatpush1.bf16.xpose.msra.mxu0 0
    %865 = vmatprep.subr.bf16.mxu0 0
    %866 = vmatpush1.bf16.xpose.msra.mxu0 0
    %867 = vmatprep.subr.bf16.mxu0 0
    %868 = vmatpush1.bf16.xpose.msra.mxu0 0
    %869 = vmatprep.subr.bf16.mxu0 0
    %870 = vmatpush1.bf16.xpose.msra.mxu0 0
    %871 = vmatprep.subr.bf16.mxu0 0
    %872 = vmatpush1.bf16.xpose.msra.mxu0 0
    %873 = vmatprep.subr.bf16.mxu0 0
    %874 = vmatpush1.bf16.xpose.msra.mxu0 0
    %875 = vmatprep.subr.bf16.mxu0 0
    %876 = vmatpush1.bf16.xpose.msra.mxu0 0
    %877 = vmatprep.subr.bf16.mxu0 0
    %878 = vmatpush1.bf16.xpose.msra.mxu0 0
    %879 = vmatprep.subr.bf16.mxu0 0
    %880 = vmatpush1.bf16.xpose.msra.mxu0 0
    %881 = vmatprep.subr.bf16.mxu0 0
    %882 = vmatpush1.bf16.xpose.msra.mxu0 0
    %883 = vmatprep.subr.bf16.mxu0 0
    %884 = vmatpush1.bf16.xpose.msra.mxu0 0
    %885 = vmatprep.subr.bf16.mxu0 0
    %886 = vmatpush1.bf16.xpose.msra.mxu0 0
    %887 = vmatprep.subr.bf16.mxu0 0
    %888 = vmatpush1.bf16.xpose.msra.mxu0 0
    %889 = vmatprep.mubr.bf16.mxu0 0
    %890 = vmatmul.mubr.bf16.gmra.mrb[0].mxu0 %v852
    %v891 = vpop.f32.mrb[0].mxu0
    %v892 = vadd.f32 0.0, %v891
    %v893 = vpop.f32.mrb[0].mxu0
    %v894 = vpop.f32.mrb[0].mxu0
    %v895 = vpop.f32.mrb[0].mxu0
    %896 = vdwg.mxu0
    %v897 = vsel %vm534, %v892, -inf
    %898 = vmax.xlane.f32.xlu0 %v897
    %v899 = vpop.xlane.xlu0 %898
    %v900 = vsub.f32 %v892, %v899
    %v901 = vmul.f32 %v900, 1.442695
    %v902 = vpow.pop %v901
    %v903 = vsel %vm534, %v902, 0.0
    %904 = vadd.xlane.f32.xlu0 %v903
    %v905 = vpop.xlane.xlu0 %904
    %v906 = vpack.c.bf16 %v902, %v902
    %907 = vrot.lane.b32.xlu0 %v528, 112
    %v908 = vpop.permute.xlu0 %907
    %v910 = vsel %vm534, %v906, 0
    %v913 = vsel %vm594, %v908, 0
    %915 = vmatprep.subr.bf16.mxu0 0
    %916 = vmatpush1.bf16.msra.mxu0 %v913
    %917 = vmatprep.subr.bf16.mxu0 0
    %918 = vmatpush1.bf16.msra.mxu0 0
    %919 = vmatprep.subr.bf16.mxu0 0
    %920 = vmatpush1.bf16.msra.mxu0 0
    %921 = vmatprep.subr.bf16.mxu0 0
    %922 = vmatpush1.bf16.msra.mxu0 0
    %923 = vmatprep.subr.bf16.mxu0 0
    %924 = vmatpush1.bf16.msra.mxu0 0
    %925 = vmatprep.subr.bf16.mxu0 0
    %926 = vmatpush1.bf16.msra.mxu0 0
    %927 = vmatprep.subr.bf16.mxu0 0
    %928 = vmatpush1.bf16.msra.mxu0 0
    %929 = vmatprep.subr.bf16.mxu0 0
    %930 = vmatpush1.bf16.msra.mxu0 0
    %931 = vmatprep.subr.bf16.mxu0 0
    %932 = vmatpush1.bf16.msra.mxu0 0
    %933 = vmatprep.subr.bf16.mxu0 0
    %934 = vmatpush1.bf16.msra.mxu0 0
    %935 = vmatprep.subr.bf16.mxu0 0
    %936 = vmatpush1.bf16.msra.mxu0 0
    %937 = vmatprep.subr.bf16.mxu0 0
    %938 = vmatpush1.bf16.msra.mxu0 0
    %939 = vmatprep.subr.bf16.mxu0 0
    %940 = vmatpush1.bf16.msra.mxu0 0
    %941 = vmatprep.subr.bf16.mxu0 0
    %942 = vmatpush1.bf16.msra.mxu0 0
    %943 = vmatprep.subr.bf16.mxu0 0
    %944 = vmatpush1.bf16.msra.mxu0 0
    %945 = vmatprep.subr.bf16.mxu0 0
    %946 = vmatpush1.bf16.msra.mxu0 0
    %947 = vmatprep.mubr.bf16.mxu0 0
    %948 = vmatmul.mubr.bf16.gmra.mrb[0].mxu0 %v910
    %v949 = vpop.f32.mrb[0].mxu0
    %v950 = vadd.f32 0.0, %v949
    %v951 = vpop.f32.mrb[0].mxu0
    %v952 = vpop.f32.mrb[0].mxu0
    %v953 = vpop.f32.mrb[0].mxu0
    %954 = vdwg.mxu0
    %v955 = vrcp.pop %v905
    %v956 = vmul.f32 %v950, %v955
    %v957 = vpack.c.bf16 %v956, %v956
    %v959 = vsel %vm534, %v957, 0
    %v962 = vsel %vm594, %v531, 0
    %964 = vmatprep.subr.bf16.mxu0 0
    %965 = vmatpush1.bf16.msra.mxu0 %v962
    %966 = vmatprep.subr.bf16.mxu0 0
    %967 = vmatpush1.bf16.msra.mxu0 0
    %968 = vmatprep.subr.bf16.mxu0 0
    %969 = vmatpush1.bf16.msra.mxu0 0
    %970 = vmatprep.subr.bf16.mxu0 0
    %971 = vmatpush1.bf16.msra.mxu0 0
    %972 = vmatprep.subr.bf16.mxu0 0
    %973 = vmatpush1.bf16.msra.mxu0 0
    %974 = vmatprep.subr.bf16.mxu0 0
    %975 = vmatpush1.bf16.msra.mxu0 0
    %976 = vmatprep.subr.bf16.mxu0 0
    %977 = vmatpush1.bf16.msra.mxu0 0
    %978 = vmatprep.subr.bf16.mxu0 0
    %979 = vmatpush1.bf16.msra.mxu0 0
    %980 = vmatprep.subr.bf16.mxu0 0
    %981 = vmatpush1.bf16.msra.mxu0 0
    %982 = vmatprep.subr.bf16.mxu0 0
    %983 = vmatpush1.bf16.msra.mxu0 0
    %984 = vmatprep.subr.bf16.mxu0 0
    %985 = vmatpush1.bf16.msra.mxu0 0
    %986 = vmatprep.subr.bf16.mxu0 0
    %987 = vmatpush1.bf16.msra.mxu0 0
    %988 = vmatprep.subr.bf16.mxu0 0
    %989 = vmatpush1.bf16.msra.mxu0 0
    %990 = vmatprep.subr.bf16.mxu0 0
    %991 = vmatpush1.bf16.msra.mxu0 0
    %992 = vmatprep.subr.bf16.mxu0 0
    %993 = vmatpush1.bf16.msra.mxu0 0
    %994 = vmatprep.subr.bf16.mxu0 0
    %995 = vmatpush1.bf16.msra.mxu0 0
    %996 = vmatprep.mubr.bf16.mxu0 0
    %997 = vmatmul.mubr.bf16.gmra.mrb[0].mxu0 %v959
    %v998 = vpop.f32.mrb[0].mxu0
    %v999 = vadd.f32 0.0, %v998
    %v1000 = vpop.f32.mrb[0].mxu0
    %v1001 = vpop.f32.mrb[0].mxu0
    %v1002 = vpop.f32.mrb[0].mxu0
    %1003 = vdwg.mxu0
    %v1004 = vadd.f32 %v842, %v999
    %1005 = vrot.lane.b32.xlu0 %v526, 104
    %v1006 = vpop.permute.xlu0 %1005
    %1007 = vrot.lane.b32.xlu0 %v527, 104
    %v1008 = vpop.permute.xlu0 %1007
    %v1010 = vsel %vm534, %v1006, 0
    %v1013 = vsel %vm534, %v1008, 0
    %1015 = vmatprep.subr.bf16.mxu0 0
    %1016 = vmatpush1.bf16.xpose.msra.mxu0 %v1013
    %1017 = vmatprep.subr.bf16.mxu0 0
    %1018 = vmatpush1.bf16.xpose.msra.mxu0 0
    %1019 = vmatprep.subr.bf16.mxu0 0
    %1020 = vmatpush1.bf16.xpose.msra.mxu0 0
    %1021 = vmatprep.subr.bf16.mxu0 0
    %1022 = vmatpush1.bf16.xpose.msra.mxu0 0
    %1023 = vmatprep.subr.bf16.mxu0 0
    %1024 = vmatpush1.bf16.xpose.msra.mxu0 0
    %1025 = vmatprep.subr.bf16.mxu0 0
    %1026 = vmatpush1.bf16.xpose.msra.mxu0 0
    %1027 = vmatprep.subr.bf16.mxu0 0
    %1028 = vmatpush1.bf16.xpose.msra.mxu0 0
    %1029 = vmatprep.subr.bf16.mxu0 0
    %1030 = vmatpush1.bf16.xpose.msra.mxu0 0
    %1031 = vmatprep.subr.bf16.mxu0 0
    %1032 = vmatpush1.bf16.xpose.msra.mxu0 0
    %1033 = vmatprep.subr.bf16.mxu0 0
    %1034 = vmatpush1.bf16.xpose.msra.mxu0 0
    %1035 = vmatprep.subr.bf16.mxu0 0
    %1036 = vmatpush1.bf16.xpose.msra.mxu0 0
    %1037 = vmatprep.subr.bf16.mxu0 0
    %1038 = vmatpush1.bf16.xpose.msra.mxu0 0
    %1039 = vmatprep.subr.bf16.mxu0 0
    %1040 = vmatpush1.bf16.xpose.msra.mxu0 0
    %1041 = vmatprep.subr.bf16.mxu0 0
    %1042 = vmatpush1.bf16.xpose.msra.mxu0 0
    %1043 = vmatprep.subr.bf16.mxu0 0
    %1044 = vmatpush1.bf16.xpose.msra.mxu0 0
    %1045 = vmatprep.subr.bf16.mxu0 0
    %1046 = vmatpush1.bf16.xpose.msra.mxu0 0
    %1047 = vmatprep.mubr.bf16.mxu0 0
    %1048 = vmatmul.mubr.bf16.gmra.mrb[0].mxu0 %v1010
    %v1049 = vpop.f32.mrb[0].mxu0
    %v1050 = vadd.f32 0.0, %v1049
    %v1051 = vpop.f32.mrb[0].mxu0
    %v1052 = vpop.f32.mrb[0].mxu0
    %v1053 = vpop.f32.mrb[0].mxu0
    %1054 = vdwg.mxu0
    %v1055 = vsel %vm534, %v1050, -inf
    %1056 = vmax.xlane.f32.xlu0 %v1055
    %v1057 = vpop.xlane.xlu0 %1056
    %v1058 = vsub.f32 %v1050, %v1057
    %v1059 = vmul.f32 %v1058, 1.442695
    %v1060 = vpow.pop %v1059
    %v1061 = vsel %vm534, %v1060, 0.0
    %1062 = vadd.xlane.f32.xlu0 %v1061
    %v1063 = vpop.xlane.xlu0 %1062
    %v1064 = vpack.c.bf16 %v1060, %v1060
    %1065 = vrot.lane.b32.xlu0 %v528, 104
    %v1066 = vpop.permute.xlu0 %1065
    %v1068 = vsel %vm534, %v1064, 0
    %v1071 = vsel %vm594, %v1066, 0
    %1073 = vmatprep.subr.bf16.mxu0 0
    %1074 = vmatpush1.bf16.msra.mxu0 %v1071
    %1075 = vmatprep.subr.bf16.mxu0 0
    %1076 = vmatpush1.bf16.msra.mxu0 0
    %1077 = vmatprep.subr.bf16.mxu0 0
    %1078 = vmatpush1.bf16.msra.mxu0 0
    %1079 = vmatprep.subr.bf16.mxu0 0
    %1080 = vmatpush1.bf16.msra.mxu0 0
    %1081 = vmatprep.subr.bf16.mxu0 0
    %1082 = vmatpush1.bf16.msra.mxu0 0
    %1083 = vmatprep.subr.bf16.mxu0 0
    %1084 = vmatpush1.bf16.msra.mxu0 0
    %1085 = vmatprep.subr.bf16.mxu0 0
    %1086 = vmatpush1.bf16.msra.mxu0 0
    %1087 = vmatprep.subr.bf16.mxu0 0
    %1088 = vmatpush1.bf16.msra.mxu0 0
    %1089 = vmatprep.subr.bf16.mxu0 0
    %1090 = vmatpush1.bf16.msra.mxu0 0
    %1091 = vmatprep.subr.bf16.mxu0 0
    %1092 = vmatpush1.bf16.msra.mxu0 0
    %1093 = vmatprep.subr.bf16.mxu0 0
    %1094 = vmatpush1.bf16.msra.mxu0 0
    %1095 = vmatprep.subr.bf16.mxu0 0
    %1096 = vmatpush1.bf16.msra.mxu0 0
    %1097 = vmatprep.subr.bf16.mxu0 0
    %1098 = vmatpush1.bf16.msra.mxu0 0
    %1099 = vmatprep.subr.bf16.mxu0 0
    %1100 = vmatpush1.bf16.msra.mxu0 0
    %1101 = vmatprep.subr.bf16.mxu0 0
    %1102 = vmatpush1.bf16.msra.mxu0 0
    %1103 = vmatprep.subr.bf16.mxu0 0
    %1104 = vmatpush1.bf16.msra.mxu0 0
    %1105 = vmatprep.mubr.bf16.mxu0 0
    %1106 = vmatmul.mubr.bf16.gmra.mrb[0].mxu0 %v1068
    %v1107 = vpop.f32.mrb[0].mxu0
    %v1108 = vadd.f32 0.0, %v1107
    %v1109 = vpop.f32.mrb[0].mxu0
    %v1110 = vpop.f32.mrb[0].mxu0
    %v1111 = vpop.f32.mrb[0].mxu0
    %1112 = vdwg.mxu0
    %v1113 = vrcp.pop %v1063
    %v1114 = vmul.f32 %v1108, %v1113
    %v1115 = vpack.c.bf16 %v1114, %v1114
    %v1117 = vsel %vm534, %v1115, 0
    %v1120 = vsel %vm594, %v532, 0
    %1122 = vmatprep.subr.bf16.mxu0 0
    %1123 = vmatpush1.bf16.msra.mxu0 %v1120
    %1124 = vmatprep.subr.bf16.mxu0 0
    %1125 = vmatpush1.bf16.msra.mxu0 0
    %1126 = vmatprep.subr.bf16.mxu0 0
    %1127 = vmatpush1.bf16.msra.mxu0 0
    %1128 = vmatprep.subr.bf16.mxu0 0
    %1129 = vmatpush1.bf16.msra.mxu0 0
    %1130 = vmatprep.subr.bf16.mxu0 0
    %1131 = vmatpush1.bf16.msra.mxu0 0
    %1132 = vmatprep.subr.bf16.mxu0 0
    %1133 = vmatpush1.bf16.msra.mxu0 0
    %1134 = vmatprep.subr.bf16.mxu0 0
    %1135 = vmatpush1.bf16.msra.mxu0 0
    %1136 = vmatprep.subr.bf16.mxu0 0
    %1137 = vmatpush1.bf16.msra.mxu0 0
    %1138 = vmatprep.subr.bf16.mxu0 0
    %1139 = vmatpush1.bf16.msra.mxu0 0
    %1140 = vmatprep.subr.bf16.mxu0 0
    %1141 = vmatpush1.bf16.msra.mxu0 0
    %1142 = vmatprep.subr.bf16.mxu0 0
    %1143 = vmatpush1.bf16.msra.mxu0 0
    %1144 = vmatprep.subr.bf16.mxu0 0
    %1145 = vmatpush1.bf16.msra.mxu0 0
    %1146 = vmatprep.subr.bf16.mxu0 0
    %1147 = vmatpush1.bf16.msra.mxu0 0
    %1148 = vmatprep.subr.bf16.mxu0 0
    %1149 = vmatpush1.bf16.msra.mxu0 0
    %1150 = vmatprep.subr.bf16.mxu0 0
    %1151 = vmatpush1.bf16.msra.mxu0 0
    %1152 = vmatprep.subr.bf16.mxu0 0
    %1153 = vmatpush1.bf16.msra.mxu0 0
    %1154 = vmatprep.mubr.bf16.mxu0 0
    %1155 = vmatmul.mubr.bf16.gmra.mrb[0].mxu0 %v1117
    %v1156 = vpop.f32.mrb[0].mxu0
    %v1157 = vadd.f32 0.0, %v1156
    %v1158 = vpop.f32.mrb[0].mxu0
    %v1159 = vpop.f32.mrb[0].mxu0
    %v1160 = vpop.f32.mrb[0].mxu0
    %1161 = vdwg.mxu0
    %v1162 = vadd.f32 %v1004, %v1157
    %v1164 = vlaneseq
    %v1165 = vshrl.u32 %v1164, 7
    %v1166 = vsub.s32 0, %v1165
    %v1167 = vrot.slane %v533, %v1166
    %v1169 = vadd.f32 %v1162, %v1167
    %1170 = vst [vmem:[#allocation20] sm:$0xff] %v1169
    %v1171 = vrot.slane %v526, 4
    %v1172 = vrot.slane %v527, 4
    %v1174 = vsel %vm534, %v1171, 0
    %v1177 = vsel %vm534, %v1172, 0
    %1179 = vmatprep.subr.bf16.mxu0 0
    %1180 = vmatpush1.bf16.xpose.msra.mxu0 %v1177
    %1181 = vmatprep.subr.bf16.mxu0 0
    %1182 = vmatpush1.bf16.xpose.msra.mxu0 0
    %1183 = vmatprep.subr.bf16.mxu0 0
    %1184 = vmatpush1.bf16.xpose.msra.mxu0 0
    %1185 = vmatprep.subr.bf16.mxu0 0
    %1186 = vmatpush1.bf16.xpose.msra.mxu0 0
    %1187 = vmatprep.subr.bf16.mxu0 0
    %1188 = vmatpush1.bf16.xpose.msra.mxu0 0
    %1189 = vmatprep.subr.bf16.mxu0 0
    %1190 = vmatpush1.bf16.xpose.msra.mxu0 0
    %1191 = vmatprep.subr.bf16.mxu0 0
    %1192 = vmatpush1.bf16.xpose.msra.mxu0 0
    %1193 = vmatprep.subr.bf16.mxu0 0
    %1194 = vmatpush1.bf16.xpose.msra.mxu0 0
    %1195 = vmatprep.subr.bf16.mxu0 0
    %1196 = vmatpush1.bf16.xpose.msra.mxu0 0
    %1197 = vmatprep.subr.bf16.mxu0 0
    %1198 = vmatpush1.bf16.xpose.msra.mxu0 0
    %1199 = vmatprep.subr.bf16.mxu0 0
    %1200 = vmatpush1.bf16.xpose.msra.mxu0 0
    %1201 = vmatprep.subr.bf16.mxu0 0
    %1202 = vmatpush1.bf16.xpose.msra.mxu0 0
    %1203 = vmatprep.subr.bf16.mxu0 0
    %1204 = vmatpush1.bf16.xpose.msra.mxu0 0
    %1205 = vmatprep.subr.bf16.mxu0 0
    %1206 = vmatpush1.bf16.xpose.msra.mxu0 0
    %1207 = vmatprep.subr.bf16.mxu0 0
    %1208 = vmatpush1.bf16.xpose.msra.mxu0 0
    %1209 = vmatprep.subr.bf16.mxu0 0
    %1210 = vmatpush1.bf16.xpose.msra.mxu0 0
    %1211 = vmatprep.mubr.bf16.mxu0 0
    %1212 = vmatmul.mubr.bf16.gmra.mrb[0].mxu0 %v1174
    %v1213 = vpop.f32.mrb[0].mxu0
    %v1214 = vadd.f32 0.0, %v1213
    %v1215 = vpop.f32.mrb[0].mxu0
    %v1216 = vpop.f32.mrb[0].mxu0
    %v1217 = vpop.f32.mrb[0].mxu0
    %1218 = vdwg.mxu0
    %v1219 = vsel %vm534, %v1214, -inf
    %1220 = vmax.xlane.f32.xlu0 %v1219
    %v1221 = vpop.xlane.xlu0 %1220
    %v1222 = vsub.f32 %v1214, %v1221
    %v1223 = vmul.f32 %v1222, 1.442695
    %v1224 = vpow.pop %v1223
    %v1225 = vsel %vm534, %v1224, 0.0
    %1226 = vadd.xlane.f32.xlu0 %v1225
    %v1227 = vpop.xlane.xlu0 %1226
    %v1228 = vpack.c.bf16 %v1224, %v1224
    %v1229 = vrot.slane %v528, 4
    %v1231 = vsel %vm534, %v1228, 0
    %v1234 = vsel %vm594, %v1229, 0
    %1236 = vmatprep.subr.bf16.mxu0 0
    %1237 = vmatpush1.bf16.msra.mxu0 %v1234
    %1238 = vmatprep.subr.bf16.mxu0 0
    %1239 = vmatpush1.bf16.msra.mxu0 0
    %1240 = vmatprep.subr.bf16.mxu0 0
    %1241 = vmatpush1.bf16.msra.mxu0 0
    %1242 = vmatprep.subr.bf16.mxu0 0
    %1243 = vmatpush1.bf16.msra.mxu0 0
    %1244 = vmatprep.subr.bf16.mxu0 0
    %1245 = vmatpush1.bf16.msra.mxu0 0
    %1246 = vmatprep.subr.bf16.mxu0 0
    %1247 = vmatpush1.bf16.msra.mxu0 0
    %1248 = vmatprep.subr.bf16.mxu0 0
    %1249 = vmatpush1.bf16.msra.mxu0 0
    %1250 = vmatprep.subr.bf16.mxu0 0
    %1251 = vmatpush1.bf16.msra.mxu0 0
    %1252 = vmatprep.subr.bf16.mxu0 0
    %1253 = vmatpush1.bf16.msra.mxu0 0
    %1254 = vmatprep.subr.bf16.mxu0 0
    %1255 = vmatpush1.bf16.msra.mxu0 0
    %1256 = vmatprep.subr.bf16.mxu0 0
    %1257 = vmatpush1.bf16.msra.mxu0 0
    %1258 = vmatprep.subr.bf16.mxu0 0
    %1259 = vmatpush1.bf16.msra.mxu0 0
    %1260 = vmatprep.subr.bf16.mxu0 0
    %1261 = vmatpush1.bf16.msra.mxu0 0
    %1262 = vmatprep.subr.bf16.mxu0 0
    %1263 = vmatpush1.bf16.msra.mxu0 0
    %1264 = vmatprep.subr.bf16.mxu0 0
    %1265 = vmatpush1.bf16.msra.mxu0 0
    %1266 = vmatprep.subr.bf16.mxu0 0
    %1267 = vmatpush1.bf16.msra.mxu0 0
    %1268 = vmatprep.mubr.bf16.mxu0 0
    %1269 = vmatmul.mubr.bf16.gmra.mrb[0].mxu0 %v1231
    %v1270 = vpop.f32.mrb[0].mxu0
    %v1271 = vadd.f32 0.0, %v1270
    %v1272 = vpop.f32.mrb[0].mxu0
    %v1273 = vpop.f32.mrb[0].mxu0
    %v1274 = vpop.f32.mrb[0].mxu0
    %1275 = vdwg.mxu0
    %v1276 = vrcp.pop %v1227
    %v1277 = vmul.f32 %v1271, %v1276
    %v1278 = vpack.c.bf16 %v1277, %v1277
    %1279 = vrot.lane.b32.xlu0 %v1171, 120
    %v1280 = vpop.permute.xlu0 %1279
    %1281 = vrot.lane.b32.xlu0 %v1172, 120
    %v1282 = vpop.permute.xlu0 %1281
    %v1284 = vsel %vm534, %v1280, 0
    %v1287 = vsel %vm534, %v1282, 0
    %1289 = vmatprep.subr.bf16.mxu0 0
    %1290 = vmatpush1.bf16.xpose.msra.mxu0 %v1287
    %1291 = vmatprep.subr.bf16.mxu0 0
    %1292 = vmatpush1.bf16.xpose.msra.mxu0 0
    %1293 = vmatprep.subr.bf16.mxu0 0
    %1294 = vmatpush1.bf16.xpose.msra.mxu0 0
    %1295 = vmatprep.subr.bf16.mxu0 0
    %1296 = vmatpush1.bf16.xpose.msra.mxu0 0
    %1297 = vmatprep.subr.bf16.mxu0 0
    %1298 = vmatpush1.bf16.xpose.msra.mxu0 0
    %1299 = vmatprep.subr.bf16.mxu0 0
    %1300 = vmatpush1.bf16.xpose.msra.mxu0 0
    %1301 = vmatprep.subr.bf16.mxu0 0
    %1302 = vmatpush1.bf16.xpose.msra.mxu0 0
    %1303 = vmatprep.subr.bf16.mxu0 0
    %1304 = vmatpush1.bf16.xpose.msra.mxu0 0
    %1305 = vmatprep.subr.bf16.mxu0 0
    %1306 = vmatpush1.bf16.xpose.msra.mxu0 0
    %1307 = vmatprep.subr.bf16.mxu0 0
    %1308 = vmatpush1.bf16.xpose.msra.mxu0 0
    %1309 = vmatprep.subr.bf16.mxu0 0
    %1310 = vmatpush1.bf16.xpose.msra.mxu0 0
    %1311 = vmatprep.subr.bf16.mxu0 0
    %1312 = vmatpush1.bf16.xpose.msra.mxu0 0
    %1313 = vmatprep.subr.bf16.mxu0 0
    %1314 = vmatpush1.bf16.xpose.msra.mxu0 0
    %1315 = vmatprep.subr.bf16.mxu0 0
    %1316 = vmatpush1.bf16.xpose.msra.mxu0 0
    %1317 = vmatprep.subr.bf16.mxu0 0
    %1318 = vmatpush1.bf16.xpose.msra.mxu0 0
    %1319 = vmatprep.subr.bf16.mxu0 0
    %1320 = vmatpush1.bf16.xpose.msra.mxu0 0
    %1321 = vmatprep.mubr.bf16.mxu0 0
    %1322 = vmatmul.mubr.bf16.gmra.mrb[0].mxu0 %v1284
    %v1323 = vpop.f32.mrb[0].mxu0
    %v1324 = vadd.f32 0.0, %v1323
    %v1325 = vpop.f32.mrb[0].mxu0
    %v1326 = vpop.f32.mrb[0].mxu0
    %v1327 = vpop.f32.mrb[0].mxu0
    %1328 = vdwg.mxu0
    %v1329 = vsel %vm534, %v1324, -inf
    %1330 = vmax.xlane.f32.xlu0 %v1329
    %v1331 = vpop.xlane.xlu0 %1330
    %v1332 = vsub.f32 %v1324, %v1331
    %v1333 = vmul.f32 %v1332, 1.442695
    %v1334 = vpow.pop %v1333
    %v1335 = vsel %vm534, %v1334, 0.0
    %1336 = vadd.xlane.f32.xlu0 %v1335
    %v1337 = vpop.xlane.xlu0 %1336
    %v1338 = vpack.c.bf16 %v1334, %v1334
    %1339 = vrot.lane.b32.xlu0 %v1229, 120
    %v1340 = vpop.permute.xlu0 %1339
    %v1342 = vsel %vm534, %v1338, 0
    %v1345 = vsel %vm594, %v1340, 0
    %1347 = vmatprep.subr.bf16.mxu0 0
    %1348 = vmatpush1.bf16.msra.mxu0 %v1345
    %1349 = vmatprep.subr.bf16.mxu0 0
    %1350 = vmatpush1.bf16.msra.mxu0 0
    %1351 = vmatprep.subr.bf16.mxu0 0
    %1352 = vmatpush1.bf16.msra.mxu0 0
    %1353 = vmatprep.subr.bf16.mxu0 0
    %1354 = vmatpush1.bf16.msra.mxu0 0
    %1355 = vmatprep.subr.bf16.mxu0 0
    %1356 = vmatpush1.bf16.msra.mxu0 0
    %1357 = vmatprep.subr.bf16.mxu0 0
    %1358 = vmatpush1.bf16.msra.mxu0 0
    %1359 = vmatprep.subr.bf16.mxu0 0
    %1360 = vmatpush1.bf16.msra.mxu0 0
    %1361 = vmatprep.subr.bf16.mxu0 0
    %1362 = vmatpush1.bf16.msra.mxu0 0
    %1363 = vmatprep.subr.bf16.mxu0 0
    %1364 = vmatpush1.bf16.msra.mxu0 0
    %1365 = vmatprep.subr.bf16.mxu0 0
    %1366 = vmatpush1.bf16.msra.mxu0 0
    %1367 = vmatprep.subr.bf16.mxu0 0
    %1368 = vmatpush1.bf16.msra.mxu0 0
    %1369 = vmatprep.subr.bf16.mxu0 0
    %1370 = vmatpush1.bf16.msra.mxu0 0
    %1371 = vmatprep.subr.bf16.mxu0 0
    %1372 = vmatpush1.bf16.msra.mxu0 0
    %1373 = vmatprep.subr.bf16.mxu0 0
    %1374 = vmatpush1.bf16.msra.mxu0 0
    %1375 = vmatprep.subr.bf16.mxu0 0
    %1376 = vmatpush1.bf16.msra.mxu0 0
    %1377 = vmatprep.subr.bf16.mxu0 0
    %1378 = vmatpush1.bf16.msra.mxu0 0
    %1379 = vmatprep.mubr.bf16.mxu0 0
    %1380 = vmatmul.mubr.bf16.gmra.mrb[0].mxu0 %v1342
    %v1381 = vpop.f32.mrb[0].mxu0
    %v1382 = vadd.f32 0.0, %v1381
    %v1383 = vpop.f32.mrb[0].mxu0
    %v1384 = vpop.f32.mrb[0].mxu0
    %v1385 = vpop.f32.mrb[0].mxu0
    %1386 = vdwg.mxu0
    %v1387 = vrcp.pop %v1337
    %v1388 = vmul.f32 %v1382, %v1387
    %v1389 = vpack.c.bf16 %v1388, %v1388
    %v1391 = vsel %vm534, %v1389, 0
    %1393 = vmatprep.subr.bf16.mxu0 0
    %1394 = vmatpush1.bf16.msra.mxu0 %v759
    %1395 = vmatprep.subr.bf16.mxu0 0
    %1396 = vmatpush1.bf16.msra.mxu0 0
    %1397 = vmatprep.subr.bf16.mxu0 0
    %1398 = vmatpush1.bf16.msra.mxu0 0
    %1399 = vmatprep.subr.bf16.mxu0 0
    %1400 = vmatpush1.bf16.msra.mxu0 0
    %1401 = vmatprep.subr.bf16.mxu0 0
    %1402 = vmatpush1.bf16.msra.mxu0 0
    %1403 = vmatprep.subr.bf16.mxu0 0
    %1404 = vmatpush1.bf16.msra.mxu0 0
    %1405 = vmatprep.subr.bf16.mxu0 0
    %1406 = vmatpush1.bf16.msra.mxu0 0
    %1407 = vmatprep.subr.bf16.mxu0 0
    %1408 = vmatpush1.bf16.msra.mxu0 0
    %1409 = vmatprep.subr.bf16.mxu0 0
    %1410 = vmatpush1.bf16.msra.mxu0 0
    %1411 = vmatprep.subr.bf16.mxu0 0
    %1412 = vmatpush1.bf16.msra.mxu0 0
    %1413 = vmatprep.subr.bf16.mxu0 0
    %1414 = vmatpush1.bf16.msra.mxu0 0
    %1415 = vmatprep.subr.bf16.mxu0 0
    %1416 = vmatpush1.bf16.msra.mxu0 0
    %1417 = vmatprep.subr.bf16.mxu0 0
    %1418 = vmatpush1.bf16.msra.mxu0 0
    %1419 = vmatprep.subr.bf16.mxu0 0
    %1420 = vmatpush1.bf16.msra.mxu0 0
    %1421 = vmatprep.subr.bf16.mxu0 0
    %1422 = vmatpush1.bf16.msra.mxu0 0
    %1423 = vmatprep.subr.bf16.mxu0 0
    %1424 = vmatpush1.bf16.msra.mxu0 0
    %1425 = vmatprep.mubr.bf16.mxu0 0
    %1426 = vmatmul.mubr.bf16.gmra.mrb[0].mxu0 %v1391
    %v1427 = vpop.f32.mrb[0].mxu0
    %v1428 = vadd.f32 0.0, %v1427
    %v1429 = vpop.f32.mrb[0].mxu0
    %v1430 = vpop.f32.mrb[0].mxu0
    %v1431 = vpop.f32.mrb[0].mxu0
    %1432 = vdwg.mxu0
    %v1434 = vsel %vm534, %v1278, 0
    %1436 = vmatprep.subr.bf16.mxu0 0
    %1437 = vmatpush1.bf16.msra.mxu0 %v805
    %1438 = vmatprep.subr.bf16.mxu0 0
    %1439 = vmatpush1.bf16.msra.mxu0 0
    %1440 = vmatprep.subr.bf16.mxu0 0
    %1441 = vmatpush1.bf16.msra.mxu0 0
    %1442 = vmatprep.subr.bf16.mxu0 0
    %1443 = vmatpush1.bf16.msra.mxu0 0
    %1444 = vmatprep.subr.bf16.mxu0 0
    %1445 = vmatpush1.bf16.msra.mxu0 0
    %1446 = vmatprep.subr.bf16.mxu0 0
    %1447 = vmatpush1.bf16.msra.mxu0 0
    %1448 = vmatprep.subr.bf16.mxu0 0
    %1449 = vmatpush1.bf16.msra.mxu0 0
    %1450 = vmatprep.subr.bf16.mxu0 0
    %1451 = vmatpush1.bf16.msra.mxu0 0
    %1452 = vmatprep.subr.bf16.mxu0 0
    %1453 = vmatpush1.bf16.msra.mxu0 0
    %1454 = vmatprep.subr.bf16.mxu0 0
    %1455 = vmatpush1.bf16.msra.mxu0 0
    %1456 = vmatprep.subr.bf16.mxu0 0
    %1457 = vmatpush1.bf16.msra.mxu0 0
    %1458 = vmatprep.subr.bf16.mxu0 0
    %1459 = vmatpush1.bf16.msra.mxu0 0
    %1460 = vmatprep.subr.bf16.mxu0 0
    %1461 = vmatpush1.bf16.msra.mxu0 0
    %1462 = vmatprep.subr.bf16.mxu0 0
    %1463 = vmatpush1.bf16.msra.mxu0 0
    %1464 = vmatprep.subr.bf16.mxu0 0
    %1465 = vmatpush1.bf16.msra.mxu0 0
    %1466 = vmatprep.subr.bf16.mxu0 0
    %1467 = vmatpush1.bf16.msra.mxu0 0
    %1468 = vmatprep.mubr.bf16.mxu0 0
    %1469 = vmatmul.mubr.bf16.gmra.mrb[0].mxu0 %v1434
    %v1470 = vpop.f32.mrb[0].mxu0
    %v1471 = vadd.f32 %v1428, %v1470
    %v1472 = vpop.f32.mrb[0].mxu0
    %v1473 = vpop.f32.mrb[0].mxu0
    %v1474 = vpop.f32.mrb[0].mxu0
    %1475 = vdwg.mxu0
    %1476 = vrot.lane.b32.xlu0 %v1171, 112
    %v1477 = vpop.permute.xlu0 %1476
    %1478 = vrot.lane.b32.xlu0 %v1172, 112
    %v1479 = vpop.permute.xlu0 %1478
    %v1481 = vsel %vm534, %v1477, 0
    %v1484 = vsel %vm534, %v1479, 0
    %1486 = vmatprep.subr.bf16.mxu0 0
    %1487 = vmatpush1.bf16.xpose.msra.mxu0 %v1484
    %1488 = vmatprep.subr.bf16.mxu0 0
    %1489 = vmatpush1.bf16.xpose.msra.mxu0 0
    %1490 = vmatprep.subr.bf16.mxu0 0
    %1491 = vmatpush1.bf16.xpose.msra.mxu0 0
    %1492 = vmatprep.subr.bf16.mxu0 0
    %1493 = vmatpush1.bf16.xpose.msra.mxu0 0
    %1494 = vmatprep.subr.bf16.mxu0 0
    %1495 = vmatpush1.bf16.xpose.msra.mxu0 0
    %1496 = vmatprep.subr.bf16.mxu0 0
    %1497 = vmatpush1.bf16.xpose.msra.mxu0 0
    %1498 = vmatprep.subr.bf16.mxu0 0
    %1499 = vmatpush1.bf16.xpose.msra.mxu0 0
    %1500 = vmatprep.subr.bf16.mxu0 0
    %1501 = vmatpush1.bf16.xpose.msra.mxu0 0
    %1502 = vmatprep.subr.bf16.mxu0 0
    %1503 = vmatpush1.bf16.xpose.msra.mxu0 0
    %1504 = vmatprep.subr.bf16.mxu0 0
    %1505 = vmatpush1.bf16.xpose.msra.mxu0 0
    %1506 = vmatprep.subr.bf16.mxu0 0
    %1507 = vmatpush1.bf16.xpose.msra.mxu0 0
    %1508 = vmatprep.subr.bf16.mxu0 0
    %1509 = vmatpush1.bf16.xpose.msra.mxu0 0
    %1510 = vmatprep.subr.bf16.mxu0 0
    %1511 = vmatpush1.bf16.xpose.msra.mxu0 0
    %1512 = vmatprep.subr.bf16.mxu0 0
    %1513 = vmatpush1.bf16.xpose.msra.mxu0 0
    %1514 = vmatprep.subr.bf16.mxu0 0
    %1515 = vmatpush1.bf16.xpose.msra.mxu0 0
    %1516 = vmatprep.subr.bf16.mxu0 0
    %1517 = vmatpush1.bf16.xpose.msra.mxu0 0
    %1518 = vmatprep.mubr.bf16.mxu0 0
    %1519 = vmatmul.mubr.bf16.gmra.mrb[0].mxu0 %v1481
    %v1520 = vpop.f32.mrb[0].mxu0
    %v1521 = vadd.f32 0.0, %v1520
    %v1522 = vpop.f32.mrb[0].mxu0
    %v1523 = vpop.f32.mrb[0].mxu0
    %v1524 = vpop.f32.mrb[0].mxu0
    %1525 = vdwg.mxu0
    %v1526 = vsel %vm534, %v1521, -inf
    %1527 = vmax.xlane.f32.xlu0 %v1526
    %v1528 = vpop.xlane.xlu0 %1527
    %v1529 = vsub.f32 %v1521, %v1528
    %v1530 = vmul.f32 %v1529, 1.442695
    %v1531 = vpow.pop %v1530
    %v1532 = vsel %vm534, %v1531, 0.0
    %1533 = vadd.xlane.f32.xlu0 %v1532
    %v1534 = vpop.xlane.xlu0 %1533
    %v1535 = vpack.c.bf16 %v1531, %v1531
    %1536 = vrot.lane.b32.xlu0 %v1229, 112
    %v1537 = vpop.permute.xlu0 %1536
    %v1539 = vsel %vm534, %v1535, 0
    %v1542 = vsel %vm594, %v1537, 0
    %1544 = vmatprep.subr.bf16.mxu0 0
    %1545 = vmatpush1.bf16.msra.mxu0 %v1542
    %1546 = vmatprep.subr.bf16.mxu0 0
    %1547 = vmatpush1.bf16.msra.mxu0 0
    %1548 = vmatprep.subr.bf16.mxu0 0
    %1549 = vmatpush1.bf16.msra.mxu0 0
    %1550 = vmatprep.subr.bf16.mxu0 0
    %1551 = vmatpush1.bf16.msra.mxu0 0
    %1552 = vmatprep.subr.bf16.mxu0 0
    %1553 = vmatpush1.bf16.msra.mxu0 0
    %1554 = vmatprep.subr.bf16.mxu0 0
    %1555 = vmatpush1.bf16.msra.mxu0 0
    %1556 = vmatprep.subr.bf16.mxu0 0
    %1557 = vmatpush1.bf16.msra.mxu0 0
    %1558 = vmatprep.subr.bf16.mxu0 0
    %1559 = vmatpush1.bf16.msra.mxu0 0
    %1560 = vmatprep.subr.bf16.mxu0 0
    %1561 = vmatpush1.bf16.msra.mxu0 0
    %1562 = vmatprep.subr.bf16.mxu0 0
    %1563 = vmatpush1.bf16.msra.mxu0 0
    %1564 = vmatprep.subr.bf16.mxu0 0
    %1565 = vmatpush1.bf16.msra.mxu0 0
    %1566 = vmatprep.subr.bf16.mxu0 0
    %1567 = vmatpush1.bf16.msra.mxu0 0
    %1568 = vmatprep.subr.bf16.mxu0 0
    %1569 = vmatpush1.bf16.msra.mxu0 0
    %1570 = vmatprep.subr.bf16.mxu0 0
    %1571 = vmatpush1.bf16.msra.mxu0 0
    %1572 = vmatprep.subr.bf16.mxu0 0
    %1573 = vmatpush1.bf16.msra.mxu0 0
    %1574 = vmatprep.subr.bf16.mxu0 0
    %1575 = vmatpush1.bf16.msra.mxu0 0
    %1576 = vmatprep.mubr.bf16.mxu0 0
    %1577 = vmatmul.mubr.bf16.gmra.mrb[0].mxu0 %v1539
    %v1578 = vpop.f32.mrb[0].mxu0
    %v1579 = vadd.f32 0.0, %v1578
    %v1580 = vpop.f32.mrb[0].mxu0
    %v1581 = vpop.f32.mrb[0].mxu0
    %v1582 = vpop.f32.mrb[0].mxu0
    %1583 = vdwg.mxu0
    %v1584 = vrcp.pop %v1534
    %v1585 = vmul.f32 %v1579, %v1584
    %v1586 = vpack.c.bf16 %v1585, %v1585
    %v1588 = vsel %vm534, %v1586, 0
    %1590 = vmatprep.subr.bf16.mxu0 0
    %1591 = vmatpush1.bf16.msra.mxu0 %v962
    %1592 = vmatprep.subr.bf16.mxu0 0
    %1593 = vmatpush1.bf16.msra.mxu0 0
    %1594 = vmatprep.subr.bf16.mxu0 0
    %1595 = vmatpush1.bf16.msra.mxu0 0
    %1596 = vmatprep.subr.bf16.mxu0 0
    %1597 = vmatpush1.bf16.msra.mxu0 0
    %1598 = vmatprep.subr.bf16.mxu0 0
    %1599 = vmatpush1.bf16.msra.mxu0 0
    %1600 = vmatprep.subr.bf16.mxu0 0
    %1601 = vmatpush1.bf16.msra.mxu0 0
    %1602 = vmatprep.subr.bf16.mxu0 0
    %1603 = vmatpush1.bf16.msra.mxu0 0
    %1604 = vmatprep.subr.bf16.mxu0 0
    %1605 = vmatpush1.bf16.msra.mxu0 0
    %1606 = vmatprep.subr.bf16.mxu0 0
    %1607 = vmatpush1.bf16.msra.mxu0 0
    %1608 = vmatprep.subr.bf16.mxu0 0
    %1609 = vmatpush1.bf16.msra.mxu0 0
    %1610 = vmatprep.subr.bf16.mxu0 0
    %1611 = vmatpush1.bf16.msra.mxu0 0
    %1612 = vmatprep.subr.bf16.mxu0 0
    %1613 = vmatpush1.bf16.msra.mxu0 0
    %1614 = vmatprep.subr.bf16.mxu0 0
    %1615 = vmatpush1.bf16.msra.mxu0 0
    %1616 = vmatprep.subr.bf16.mxu0 0
    %1617 = vmatpush1.bf16.msra.mxu0 0
    %1618 = vmatprep.subr.bf16.mxu0 0
    %1619 = vmatpush1.bf16.msra.mxu0 0
    %1620 = vmatprep.subr.bf16.mxu0 0
    %1621 = vmatpush1.bf16.msra.mxu0 0
    %1622 = vmatprep.mubr.bf16.mxu0 0
    %1623 = vmatmul.mubr.bf16.gmra.mrb[0].mxu0 %v1588
    %v1624 = vpop.f32.mrb[0].mxu0
    %v1625 = vadd.f32 0.0, %v1624
    %v1626 = vpop.f32.mrb[0].mxu0
    %v1627 = vpop.f32.mrb[0].mxu0
    %v1628 = vpop.f32.mrb[0].mxu0
    %1629 = vdwg.mxu0
    %v1630 = vadd.f32 %v1471, %v1625
    %1631 = vrot.lane.b32.xlu0 %v1171, 104
    %v1632 = vpop.permute.xlu0 %1631
    %1633 = vrot.lane.b32.xlu0 %v1172, 104
    %v1634 = vpop.permute.xlu0 %1633
    %v1636 = vsel %vm534, %v1632, 0
    %v1639 = vsel %vm534, %v1634, 0
    %1641 = vmatprep.subr.bf16.mxu0 0
    %1642 = vmatpush1.bf16.xpose.msra.mxu0 %v1639
    %1643 = vmatprep.subr.bf16.mxu0 0
    %1644 = vmatpush1.bf16.xpose.msra.mxu0 0
    %1645 = vmatprep.subr.bf16.mxu0 0
    %1646 = vmatpush1.bf16.xpose.msra.mxu0 0
    %1647 = vmatprep.subr.bf16.mxu0 0
    %1648 = vmatpush1.bf16.xpose.msra.mxu0 0
    %1649 = vmatprep.subr.bf16.mxu0 0
    %1650 = vmatpush1.bf16.xpose.msra.mxu0 0
    %1651 = vmatprep.subr.bf16.mxu0 0
    %1652 = vmatpush1.bf16.xpose.msra.mxu0 0
    %1653 = vmatprep.subr.bf16.mxu0 0
    %1654 = vmatpush1.bf16.xpose.msra.mxu0 0
    %1655 = vmatprep.subr.bf16.mxu0 0
    %1656 = vmatpush1.bf16.xpose.msra.mxu0 0
    %1657 = vmatprep.subr.bf16.mxu0 0
    %1658 = vmatpush1.bf16.xpose.msra.mxu0 0
    %1659 = vmatprep.subr.bf16.mxu0 0
    %1660 = vmatpush1.bf16.xpose.msra.mxu0 0
    %1661 = vmatprep.subr.bf16.mxu0 0
    %1662 = vmatpush1.bf16.xpose.msra.mxu0 0
    %1663 = vmatprep.subr.bf16.mxu0 0
    %1664 = vmatpush1.bf16.xpose.msra.mxu0 0
    %1665 = vmatprep.subr.bf16.mxu0 0
    %1666 = vmatpush1.bf16.xpose.msra.mxu0 0
    %1667 = vmatprep.subr.bf16.mxu0 0
    %1668 = vmatpush1.bf16.xpose.msra.mxu0 0
    %1669 = vmatprep.subr.bf16.mxu0 0
    %1670 = vmatpush1.bf16.xpose.msra.mxu0 0
    %1671 = vmatprep.subr.bf16.mxu0 0
    %1672 = vmatpush1.bf16.xpose.msra.mxu0 0
    %1673 = vmatprep.mubr.bf16.mxu0 0
    %1674 = vmatmul.mubr.bf16.gmra.mrb[0].mxu0 %v1636
    %v1675 = vpop.f32.mrb[0].mxu0
    %v1676 = vadd.f32 0.0, %v1675
    %v1677 = vpop.f32.mrb[0].mxu0
    %v1678 = vpop.f32.mrb[0].mxu0
    %v1679 = vpop.f32.mrb[0].mxu0
    %1680 = vdwg.mxu0
    %v1681 = vsel %vm534, %v1676, -inf
    %1682 = vmax.xlane.f32.xlu0 %v1681
    %v1683 = vpop.xlane.xlu0 %1682
    %v1684 = vsub.f32 %v1676, %v1683
    %v1685 = vmul.f32 %v1684, 1.442695
    %v1686 = vpow.pop %v1685
    %v1687 = vsel %vm534, %v1686, 0.0
    %1688 = vadd.xlane.f32.xlu0 %v1687
    %v1689 = vpop.xlane.xlu0 %1688
    %v1690 = vpack.c.bf16 %v1686, %v1686
    %1691 = vrot.lane.b32.xlu0 %v1229, 104
    %v1692 = vpop.permute.xlu0 %1691
    %v1694 = vsel %vm534, %v1690, 0
    %v1697 = vsel %vm594, %v1692, 0
    %1699 = vmatprep.subr.bf16.mxu0 0
    %1700 = vmatpush1.bf16.msra.mxu0 %v1697
    %1701 = vmatprep.subr.bf16.mxu0 0
    %1702 = vmatpush1.bf16.msra.mxu0 0
    %1703 = vmatprep.subr.bf16.mxu0 0
    %1704 = vmatpush1.bf16.msra.mxu0 0
    %1705 = vmatprep.subr.bf16.mxu0 0
    %1706 = vmatpush1.bf16.msra.mxu0 0
    %1707 = vmatprep.subr.bf16.mxu0 0
    %1708 = vmatpush1.bf16.msra.mxu0 0
    %1709 = vmatprep.subr.bf16.mxu0 0
    %1710 = vmatpush1.bf16.msra.mxu0 0
    %1711 = vmatprep.subr.bf16.mxu0 0
    %1712 = vmatpush1.bf16.msra.mxu0 0
    %1713 = vmatprep.subr.bf16.mxu0 0
    %1714 = vmatpush1.bf16.msra.mxu0 0
    %1715 = vmatprep.subr.bf16.mxu0 0
    %1716 = vmatpush1.bf16.msra.mxu0 0
    %1717 = vmatprep.subr.bf16.mxu0 0
    %1718 = vmatpush1.bf16.msra.mxu0 0
    %1719 = vmatprep.subr.bf16.mxu0 0
    %1720 = vmatpush1.bf16.msra.mxu0 0
    %1721 = vmatprep.subr.bf16.mxu0 0
    %1722 = vmatpush1.bf16.msra.mxu0 0
    %1723 = vmatprep.subr.bf16.mxu0 0
    %1724 = vmatpush1.bf16.msra.mxu0 0
    %1725 = vmatprep.subr.bf16.mxu0 0
    %1726 = vmatpush1.bf16.msra.mxu0 0
    %1727 = vmatprep.subr.bf16.mxu0 0
    %1728 = vmatpush1.bf16.msra.mxu0 0
    %1729 = vmatprep.subr.bf16.mxu0 0
    %1730 = vmatpush1.bf16.msra.mxu0 0
    %1731 = vmatprep.mubr.bf16.mxu0 0
    %1732 = vmatmul.mubr.bf16.gmra.mrb[0].mxu0 %v1694
    %v1733 = vpop.f32.mrb[0].mxu0
    %v1734 = vadd.f32 0.0, %v1733
    %v1735 = vpop.f32.mrb[0].mxu0
    %v1736 = vpop.f32.mrb[0].mxu0
    %v1737 = vpop.f32.mrb[0].mxu0
    %1738 = vdwg.mxu0
    %v1739 = vrcp.pop %v1689
    %v1740 = vmul.f32 %v1734, %v1739
    %v1741 = vpack.c.bf16 %v1740, %v1740
    %v1743 = vsel %vm534, %v1741, 0
    %1745 = vmatprep.subr.bf16.mxu0 0
    %1746 = vmatpush1.bf16.msra.mxu0 %v1120
    %1747 = vmatprep.subr.bf16.mxu0 0
    %1748 = vmatpush1.bf16.msra.mxu0 0
    %1749 = vmatprep.subr.bf16.mxu0 0
    %1750 = vmatpush1.bf16.msra.mxu0 0
    %1751 = vmatprep.subr.bf16.mxu0 0
    %1752 = vmatpush1.bf16.msra.mxu0 0
    %1753 = vmatprep.subr.bf16.mxu0 0
    %1754 = vmatpush1.bf16.msra.mxu0 0
    %1755 = vmatprep.subr.bf16.mxu0 0
    %1756 = vmatpush1.bf16.msra.mxu0 0
    %1757 = vmatprep.subr.bf16.mxu0 0
    %1758 = vmatpush1.bf16.msra.mxu0 0
    %1759 = vmatprep.subr.bf16.mxu0 0
    %1760 = vmatpush1.bf16.msra.mxu0 0
    %1761 = vmatprep.subr.bf16.mxu0 0
    %1762 = vmatpush1.bf16.msra.mxu0 0
    %1763 = vmatprep.subr.bf16.mxu0 0
    %1764 = vmatpush1.bf16.msra.mxu0 0
    %1765 = vmatprep.subr.bf16.mxu0 0
    %1766 = vmatpush1.bf16.msra.mxu0 0
    %1767 = vmatprep.subr.bf16.mxu0 0
    %1768 = vmatpush1.bf16.msra.mxu0 0
    %1769 = vmatprep.subr.bf16.mxu0 0
    %1770 = vmatpush1.bf16.msra.mxu0 0
    %1771 = vmatprep.subr.bf16.mxu0 0
    %1772 = vmatpush1.bf16.msra.mxu0 0
    %1773 = vmatprep.subr.bf16.mxu0 0
    %1774 = vmatpush1.bf16.msra.mxu0 0
    %1775 = vmatprep.subr.bf16.mxu0 0
    %1776 = vmatpush1.bf16.msra.mxu0 0
    %1777 = vmatprep.mubr.bf16.mxu0 0
    %1778 = vmatmul.mubr.bf16.gmra.mrb[0].mxu0 %v1743
    %v1779 = vpop.f32.mrb[0].mxu0
    %v1780 = vadd.f32 0.0, %v1779
    %v1781 = vpop.f32.mrb[0].mxu0
    %v1782 = vpop.f32.mrb[0].mxu0
    %v1783 = vpop.f32.mrb[0].mxu0
    %1784 = vdwg.mxu0
    %v1785 = vadd.f32 %v1630, %v1780
    %v1786 = vadd.f32 %v1785, %v1167
    %s1787 = scalar_lea.vmem [#allocation20], 8
    %1788 = vst [vmem:[%s1787] sm:$0xff] %v1786
    // Predicated region
    $region90: #{tpu_custom_call.1} parent=1 // pred_check
      _
    $region91: #{tpu_custom_call.1} parent=1 // pred_check_branch
      %1790 = sbr.rel (0) target = $region93
    $region92: #{tpu_custom_call.1} parent=1 // pred_region
      %s1792 = ssub.s32 256, 256
      %1793 = vsyncadd [#allocation4], %s1792
      %s1794 = sshll.u32 [#allocation20], 4
      %s1795 = int_to_ptr.vmem [resolvable:$true] %s1794
      %1800 = dma.vmem_to_hbm [thread:$0]  %s1795, 256, %s11, [#allocation4], 128, 128, 8
    $region93: #{tpu_custom_call.1} parent=1 // pred_fallthru
      _
    // Predicated region
    $region94: #{tpu_custom_call.1} parent=1 // pred_check
      _
    $region95: #{tpu_custom_call.1} parent=1 // pred_check_branch
      %1802 = sbr.rel (0) target = $region97
    $region96: #{tpu_custom_call.1} parent=1 // pred_region
      %1803 = dma.done [#allocation4], 256
    $region97: #{tpu_custom_call.1} parent=1 // pred_fallthru
      _
    %1804 = vsyncpa [#allocation3], 1
    %1805 = vsyncpa [#allocation6], 1
    %1806 = vsyncpa [#allocation9], 1
    %1807 = vsyncpa [#allocation12], 1
    %1808 = vsyncpa [#allocation15], 1
    %1809 = vsyncpa [#allocation18], 1
    %1810 = vsyncpa [#allocation4], 1

</llo_original>
